<compile_context>
chip_gen: v7x
topology: tpu7x:2x2x1
jax: 0.10.0
libtpu: 0.0.40
codegen_flags: <defaults>
</compile_context>

<pallas_src>
import jax
import jax.numpy as jnp
from jax.experimental import pallas as pl
from jax.experimental.pallas import tpu as pltpu

# ---------------------------------------------------------------------------
# Problem configuration (small, consistent with the module)
# ---------------------------------------------------------------------------
N = 2          # batch
C_IN = 32      # nfilters
C_OUT = 32     # nfilters_out (None -> nfilters)
H = 16
W = 16
K = 3          # kernel_size
PAD = K // 2   # padding
BN_EPS = 1e-5

WP = W + 2 * PAD          # padded width (cols padded via zeroed scale/bias lanes)
CIN_L = WP * C_IN         # lane width of lane-dense input slab  = 576
COUT_L = W * C_OUT        # lane width of lane-dense output slab = 512

# Output-column tiling of the banded conv weight.
WT = 4                    # output columns per tile
WT_IN = WT + 2 * PAD      # input (padded) columns a tile reads = 6
TIN_L = WT_IN * C_IN      # per-tile LHS lane width  = 192
TOUT_L = WT * C_OUT       # per-tile output lane width = 128 (full, unmasked stores)
NUM_T = W // WT           # 4 tiles; all tiles share the same weight slab

# Batch-stacked, zero-bordered activation scratch layout (rows = sublanes).
TOP = 2                   # zero rows above each batch block (even offset)
BOT = 2                   # zero rows below each batch block (even block size)
BLK = TOP + H + BOT       # 20 rows per batch block
ROWS = N * BLK            # 40 scratch rows
MROWS = (N - 1) * BLK + H  # 36: matmul M covering both batches in one shot


# ---------------------------------------------------------------------------
# Pallas kernel: BN-affine + ReLU + 3x3 conv (K x NUM_T banded MXU matmuls)
# ---------------------------------------------------------------------------
def bnconv_kernel(x_ref, scale_ref, bias_ref, w_ref, o_ref, pad_ref):
    # x_ref    : (N, H, WP*C_IN)        raw input, W-padded, flattened to lanes
    # scale_ref: (1, WP*C_IN)           folded BN scale (0 on the padded lanes)
    # bias_ref : (1, WP*C_IN)           folded BN bias  (0 on the padded lanes)
    # w_ref    : (K, TIN_L, TOUT_L)     compact banded conv weights, bf16
    # o_ref    : (N, H, W*C_OUT)
    # pad_ref  : (ROWS, WP*C_IN)        f32 scratch: zero-bordered relu(bn(x))

    # BN affine + ReLU in f32 at full lane occupancy.  Padded W lanes have
    # scale = bias = 0, so the activation there is exactly 0, matching the
    # conv's zero padding of relu(bn(x)).
    act = jnp.maximum(x_ref[...] * scale_ref[...] + bias_ref[...], 0.0)

    # Batch-stacked activation slab with zero border rows (conv's H padding).
    zero_top = jnp.zeros((TOP, CIN_L), jnp.float32)
    zero_bot = jnp.zeros((BOT, CIN_L), jnp.float32)
    for n in range(N):
        base = n * BLK
        pad_ref[base:base + TOP, :] = zero_top
        pad_ref[base + TOP + H:base + BLK, :] = zero_bot
        pad_ref[base + TOP:base + TOP + H, :] = act[n]

    # 3x3 conv: for each kernel row ky and each output-column tile t, one
    # (MROWS, TIN_L) @ (TIN_L, TOUT_L) MXU matmul covers the whole batch
    # (batch n's outputs live at acc rows [n*BLK, n*BLK+H); rows in between
    # are discarded).  RHS w_ref[ky] is reused back-to-back over the 4 tiles.
    # Operands bf16, accumulation f32.
    accs = [None] * NUM_T
    for ky in range(K):
        rhs = w_ref[ky]                                   # (TIN_L, TOUT_L) bf16
        r0 = TOP - PAD + ky                               # row-window start
        for t in range(NUM_T):
            c0 = t * WT * C_IN                            # 128-aligned lane start
            lhs = pad_ref[r0:r0 + MROWS, c0:c0 + TIN_L].astype(jnp.bfloat16)
            d = jnp.dot(lhs, rhs, preferred_element_type=jnp.float32)
            accs[t] = d if accs[t] is None else accs[t] + d

    # Full 128-lane, 128-aligned output stores per (batch, tile).
    for t in range(NUM_T):
        col = t * TOUT_L
        out_t = accs[t].astype(o_ref.dtype)               # (MROWS, TOUT_L)
        for n in range(N):
            o_ref[n, :, col:col + TOUT_L] = out_t[n * BLK:n * BLK + H]


# ---------------------------------------------------------------------------
# Wrapper glue (cheap, plain JAX) — BN fold, lane-dense layout, banded weights
# ---------------------------------------------------------------------------
def build_band_weight(conv_weight):
    """Compact banded weight shared by every output-column tile.

    band[ky, xin_l*C_IN + ci, xout_l*C_OUT + co] =
        conv_weight[co, ci, ky, xin_l - xout_l]   if 0 <= xin_l - xout_l < K
        0                                          otherwise
    Shape (K, TIN_L, TOUT_L) = (3, 192, 128), bf16.  For static (inference)
    weights this can be precomputed once outside the hot path.
    """
    w_taps = jnp.transpose(conv_weight, (2, 3, 1, 0))     # (Ky, Kx, Cin, Cout)
    xin = jnp.arange(WT_IN)
    xout = jnp.arange(WT)
    kxs = jnp.arange(K)
    sel = (xin[None, :, None] == xout[None, None, :] + kxs[:, None, None])
    sel = sel.astype(jnp.float32)                         # (Kx, WT_IN, WT)
    band = jnp.einsum("xpw,yxio->ypiwo", sel, w_taps)     # (Ky, WT_IN, Cin, WT, Cout)
    return band.reshape(K, TIN_L, TOUT_L).astype(jnp.bfloat16)


@jax.jit
def bnconv_pallas(x_nchw, gamma, beta, conv_weight):
    """Forward of BNConv.

    x_nchw      : (N, C_IN, H, W)     float32 (PyTorch NCHW convention)
    gamma, beta : (C_IN,)             BatchNorm2d affine params
    conv_weight : (C_OUT, C_IN, K, K) Conv2d weight (no bias)
    returns     : (N, C_OUT, H, W)
    """
    # TODO(synk): PyTorch training-mode BatchNorm also updates running_mean /
    # running_var buffers (a side effect); only the forward output is computed.
    x = jnp.transpose(x_nchw, (0, 2, 3, 1))                      # NHWC
    # Training-mode BatchNorm statistics: batch mean, biased variance.
    mean = jnp.mean(x, axis=(0, 1, 2))                           # (C_IN,)
    var = jnp.var(x, axis=(0, 1, 2))
    scale = gamma * jax.lax.rsqrt(var + BN_EPS)                  # (C_IN,)
    bias = beta - mean * scale                                   # (C_IN,)

    # Lane-dense input slab: pad W, flatten (WP, C_IN) onto the lane axis.
    x_p = jnp.pad(x, ((0, 0), (0, 0), (PAD, PAD), (0, 0)))       # (N, H, WP, C_IN)
    x_flat = x_p.reshape(N, H, CIN_L)                            # (N, H, 576)

    # Tile the folded affine across W; zero it on the padded lanes so the
    # activation there is exactly 0 (== conv zero padding of relu(bn(x))).
    zpad = jnp.zeros((PAD * C_IN,), jnp.float32)
    scale_flat = jnp.concatenate([zpad, jnp.tile(scale, W), zpad]).reshape(1, CIN_L)
    bias_flat = jnp.concatenate([zpad, jnp.tile(bias, W), zpad]).reshape(1, CIN_L)

    band = build_band_weight(conv_weight)                        # (3, 192, 128) bf16

    out_flat = pl.pallas_call(
        bnconv_kernel,
        out_shape=jax.ShapeDtypeStruct((N, H, COUT_L), jnp.float32),
        grid_spec=pltpu.PrefetchScalarGridSpec(
            num_scalar_prefetch=0,
            grid=(1,),   # whole batch in one grid step (size is overhead-bound)
            in_specs=[
                pl.BlockSpec((N, H, CIN_L), lambda i: (0, 0, 0)),
                pl.BlockSpec((1, CIN_L), lambda i: (0, 0)),
                pl.BlockSpec((1, CIN_L), lambda i: (0, 0)),
                pl.BlockSpec((K, TIN_L, TOUT_L), lambda i: (0, 0, 0)),
            ],
            out_specs=pl.BlockSpec((N, H, COUT_L), lambda i: (0, 0, 0)),
            scratch_shapes=[pltpu.VMEM((ROWS, CIN_L), jnp.float32)],
        ),
        compiler_params=pltpu.CompilerParams(
            dimension_semantics=("arbitrary",),
        ),
    )(x_flat, scale_flat, bias_flat, band)

    out_nhwc = out_flat.reshape(N, H, W, C_OUT)
    return jnp.transpose(out_nhwc, (0, 3, 1, 2))                 # back to NCHW


# ---------------------------------------------------------------------------
# Pure-JAX reference (sanity check against the kernel)
# ---------------------------------------------------------------------------
def bnconv_ref(x_nchw, gamma, beta, conv_weight):
    mean = jnp.mean(x_nchw, axis=(0, 2, 3))
    var = jnp.var(x_nchw, axis=(0, 2, 3))
    xn = (x_nchw - mean[None, :, None, None]) / jnp.sqrt(var + BN_EPS)[None, :, None, None]
    a = jnp.maximum(xn * gamma[None, :, None, None] + beta[None, :, None, None], 0.0)
    return jax.lax.conv_general_dilated(
        a, conv_weight,
        window_strides=(1, 1),
        padding=((PAD, PAD), (PAD, PAD)),
        dimension_numbers=("NCHW", "OIHW", "NCHW"),
    )


if __name__ == "__main__":
    key = jax.random.PRNGKey(0)
    kx, kg, kb, kw = jax.random.split(key, 4)

    x = jax.random.normal(kx, (N, C_IN, H, W), dtype=jnp.float32)
    gamma = 1.0 + 0.1 * jax.random.normal(kg, (C_IN,), dtype=jnp.float32)
    beta = 0.1 * jax.random.normal(kb, (C_IN,), dtype=jnp.float32)
    fan_in = C_IN * K * K
    conv_w = jax.random.normal(kw, (C_OUT, C_IN, K, K), dtype=jnp.float32) / jnp.sqrt(fan_in)

    out = jax.block_until_ready(bnconv_pallas(x, gamma, beta, conv_w))
    ref = jax.block_until_ready(bnconv_ref(x, gamma, beta, conv_w))

    assert out.shape == (N, C_OUT, H, W)
    # bf16 matmul operands with f32 accumulation -> slightly looser tolerance.
    assert jnp.allclose(out, ref, atol=2e-2, rtol=2e-2), "mismatch vs JAX reference"

    print("KERNEL_OK")
</pallas_src>

<mosaic_0001>
module attributes {stable_mosaic.version = 11 : i64} {
  func.func @bnconv_kernel(%arg0: i32, %arg1: memref<2x16x576xf32, #tpu.memory_space<vmem>>, %arg2: memref<1x576xf32, #tpu.memory_space<vmem>>, %arg3: memref<1x576xf32, #tpu.memory_space<vmem>>, %arg4: memref<3x192x128xbf16, #tpu.memory_space<vmem>>, %arg5: memref<2x16x512xf32, #tpu.memory_space<vmem>>, %arg6: memref<40x576xf32, #tpu.memory_space<vmem>>) attributes {dimension_semantics = [#tpu.dimension_semantics<arbitrary>], iteration_bounds = array<i64: 1>, scalar_prefetch = 0 : i64, scratch_operands = 1 : i64, tpu.core_type = #tpu.core_type<tc>, window_params = [{pipeline_mode = #tpu.pipeline_mode<synchronous>, transform_indices = @transform_0, window_bounds = array<i64: 2, 16, 576>}, {pipeline_mode = #tpu.pipeline_mode<synchronous>, transform_indices = @transform_1, window_bounds = array<i64: 1, 576>}, {pipeline_mode = #tpu.pipeline_mode<synchronous>, transform_indices = @transform_2, window_bounds = array<i64: 1, 576>}, {pipeline_mode = #tpu.pipeline_mode<synchronous>, transform_indices = @transform_3, window_bounds = array<i64: 3, 192, 128>}, {pipeline_mode = #tpu.pipeline_mode<synchronous>, transform_indices = @transform_4, window_bounds = array<i64: 2, 16, 512>}]} {
    %c0 = arith.constant 0 : index
    %c0_0 = arith.constant 0 : index
    %c0_1 = arith.constant 0 : index
    %0 = vector.load %arg1[%c0, %c0_0, %c0_1] : memref<2x16x576xf32, #tpu.memory_space<vmem>>, vector<2x16x576xf32>
    %c0_2 = arith.constant 0 : index
    %c0_3 = arith.constant 0 : index
    %1 = vector.load %arg2[%c0_2, %c0_3] : memref<1x576xf32, #tpu.memory_space<vmem>>, vector<1x576xf32>
    %2 = vector.shape_cast %1 : vector<1x576xf32> to vector<1x1x576xf32>
    %3 = vector.broadcast %2 : vector<1x1x576xf32> to vector<2x16x576xf32>
    %4 = arith.mulf %0, %3 : vector<2x16x576xf32>
    %c0_4 = arith.constant 0 : index
    %c0_5 = arith.constant 0 : index
    %5 = vector.load %arg3[%c0_4, %c0_5] : memref<1x576xf32, #tpu.memory_space<vmem>>, vector<1x576xf32>
    %6 = vector.shape_cast %5 : vector<1x576xf32> to vector<1x1x576xf32>
    %7 = vector.broadcast %6 : vector<1x1x576xf32> to vector<2x16x576xf32>
    %8 = arith.addf %4, %7 : vector<2x16x576xf32>
    %cst = arith.constant 0.000000e+00 : f32
    %9 = vector.broadcast %cst : f32 to vector<2x16x576xf32>
    %10 = arith.maximumf %8, %9 : vector<2x16x576xf32>
    %cst_6 = arith.constant 0.000000e+00 : f32
    %11 = vector.broadcast %cst_6 : f32 to vector<2x576xf32>
    %cst_7 = arith.constant 0.000000e+00 : f32
    %12 = vector.broadcast %cst_7 : f32 to vector<2x576xf32>
    %c0_8 = arith.constant 0 : index
    %c0_9 = arith.constant 0 : index
    %13 = vector.load %arg6[%c0_8, %c0_9] : memref<40x576xf32, #tpu.memory_space<vmem>>, vector<2x576xf32>
    tpu.vector_store %arg6[%c0_8, %c0_9], %11 {strides = array<i32>} : memref<40x576xf32, #tpu.memory_space<vmem>>, vector<2x576xf32>,
    %c18 = arith.constant 18 : index
    %c0_10 = arith.constant 0 : index
    %14 = vector.load %arg6[%c18, %c0_10] : memref<40x576xf32, #tpu.memory_space<vmem>>, vector<2x576xf32>
    tpu.vector_store %arg6[%c18, %c0_10], %12 {strides = array<i32>} : memref<40x576xf32, #tpu.memory_space<vmem>>, vector<2x576xf32>,
    %15 = vector.extract_strided_slice %10 {offsets = [0, 0, 0], sizes = [1, 16, 576], strides = [1, 1, 1]} : vector<2x16x576xf32> to vector<1x16x576xf32>
    %16 = vector.shape_cast %15 : vector<1x16x576xf32> to vector<16x576xf32>
    %c2 = arith.constant 2 : index
    %c0_11 = arith.constant 0 : index
    %17 = vector.load %arg6[%c2, %c0_11] : memref<40x576xf32, #tpu.memory_space<vmem>>, vector<16x576xf32>
    tpu.vector_store %arg6[%c2, %c0_11], %16 {strides = array<i32>} : memref<40x576xf32, #tpu.memory_space<vmem>>, vector<16x576xf32>,
    %c20 = arith.constant 20 : index
    %c0_12 = arith.constant 0 : index
    %18 = vector.load %arg6[%c20, %c0_12] : memref<40x576xf32, #tpu.memory_space<vmem>>, vector<2x576xf32>
    tpu.vector_store %arg6[%c20, %c0_12], %11 {strides = array<i32>} : memref<40x576xf32, #tpu.memory_space<vmem>>, vector<2x576xf32>,
    %c38 = arith.constant 38 : index
    %c0_13 = arith.constant 0 : index
    %19 = vector.load %arg6[%c38, %c0_13] : memref<40x576xf32, #tpu.memory_space<vmem>>, vector<2x576xf32>
    tpu.vector_store %arg6[%c38, %c0_13], %12 {strides = array<i32>} : memref<40x576xf32, #tpu.memory_space<vmem>>, vector<2x576xf32>,
    %20 = vector.extract_strided_slice %10 {offsets = [1, 0, 0], sizes = [1, 16, 576], strides = [1, 1, 1]} : vector<2x16x576xf32> to vector<1x16x576xf32>
    %21 = vector.shape_cast %20 : vector<1x16x576xf32> to vector<16x576xf32>
    %c22 = arith.constant 22 : index
    %c0_14 = arith.constant 0 : index
    %22 = vector.load %arg6[%c22, %c0_14] : memref<40x576xf32, #tpu.memory_space<vmem>>, vector<16x576xf32>
    tpu.vector_store %arg6[%c22, %c0_14], %21 {strides = array<i32>} : memref<40x576xf32, #tpu.memory_space<vmem>>, vector<16x576xf32>,
    %c0_15 = arith.constant 0 : index
    %c0_16 = arith.constant 0 : index
    %c0_17 = arith.constant 0 : index
    %23 = vector.load %arg4[%c0_15, %c0_16, %c0_17] : memref<3x192x128xbf16, #tpu.memory_space<vmem>>, vector<1x192x128xbf16>
    %24 = vector.shape_cast %23 : vector<1x192x128xbf16> to vector<192x128xbf16>
    %c1 = arith.constant 1 : index
    %c0_18 = arith.constant 0 : index
    %25 = vector.load %arg6[%c1, %c0_18] : memref<40x576xf32, #tpu.memory_space<vmem>>, vector<36x192xf32>
    %26 = arith.truncf %25 : vector<36x192xf32> to vector<36x192xbf16>
    %cst_19 = arith.constant dense<0.000000e+00> : vector<36x128xf32>
    %27 = tpu.matmul %26, %24, %cst_19 {dimension_numbers = #tpu.dot_dimension_numbers<[1], [0], [0], [1], [0, 0, 1, 1], [], []>} : vector<36x192xbf16>, vector<192x128xbf16>, vector<36x128xf32> -> vector<36x128xf32>
    %c1_20 = arith.constant 1 : index
    %c128 = arith.constant 128 : index
    %28 = vector.load %arg6[%c1_20, %c128] : memref<40x576xf32, #tpu.memory_space<vmem>>, vector<36x192xf32>
    %29 = arith.truncf %28 : vector<36x192xf32> to vector<36x192xbf16>
    %cst_21 = arith.constant dense<0.000000e+00> : vector<36x128xf32>
    %30 = tpu.matmul %29, %24, %cst_21 {dimension_numbers = #tpu.dot_dimension_numbers<[1], [0], [0], [1], [0, 0, 1, 1], [], []>} : vector<36x192xbf16>, vector<192x128xbf16>, vector<36x128xf32> -> vector<36x128xf32>
    %c1_22 = arith.constant 1 : index
    %c256 = arith.constant 256 : index
    %31 = vector.load %arg6[%c1_22, %c256] : memref<40x576xf32, #tpu.memory_space<vmem>>, vector<36x192xf32>
    %32 = arith.truncf %31 : vector<36x192xf32> to vector<36x192xbf16>
    %cst_23 = arith.constant dense<0.000000e+00> : vector<36x128xf32>
    %33 = tpu.matmul %32, %24, %cst_23 {dimension_numbers = #tpu.dot_dimension_numbers<[1], [0], [0], [1], [0, 0, 1, 1], [], []>} : vector<36x192xbf16>, vector<192x128xbf16>, vector<36x128xf32> -> vector<36x128xf32>
    %c1_24 = arith.constant 1 : index
    %c384 = arith.constant 384 : index
    %34 = vector.load %arg6[%c1_24, %c384] : memref<40x576xf32, #tpu.memory_space<vmem>>, vector<36x192xf32>
    %35 = arith.truncf %34 : vector<36x192xf32> to vector<36x192xbf16>
    %cst_25 = arith.constant dense<0.000000e+00> : vector<36x128xf32>
    %36 = tpu.matmul %35, %24, %cst_25 {dimension_numbers = #tpu.dot_dimension_numbers<[1], [0], [0], [1], [0, 0, 1, 1], [], []>} : vector<36x192xbf16>, vector<192x128xbf16>, vector<36x128xf32> -> vector<36x128xf32>
    %c1_26 = arith.constant 1 : index
    %c0_27 = arith.constant 0 : index
    %c0_28 = arith.constant 0 : index
    %37 = vector.load %arg4[%c1_26, %c0_27, %c0_28] : memref<3x192x128xbf16, #tpu.memory_space<vmem>>, vector<1x192x128xbf16>
    %38 = vector.shape_cast %37 : vector<1x192x128xbf16> to vector<192x128xbf16>
    %c2_29 = arith.constant 2 : index
    %c0_30 = arith.constant 0 : index
    %39 = vector.load %arg6[%c2_29, %c0_30] : memref<40x576xf32, #tpu.memory_space<vmem>>, vector<36x192xf32>
    %40 = arith.truncf %39 : vector<36x192xf32> to vector<36x192xbf16>
    %cst_31 = arith.constant dense<0.000000e+00> : vector<36x128xf32>
    %41 = tpu.matmul %40, %38, %cst_31 {dimension_numbers = #tpu.dot_dimension_numbers<[1], [0], [0], [1], [0, 0, 1, 1], [], []>} : vector<36x192xbf16>, vector<192x128xbf16>, vector<36x128xf32> -> vector<36x128xf32>
    %42 = arith.addf %27, %41 : vector<36x128xf32>
    %c2_32 = arith.constant 2 : index
    %c128_33 = arith.constant 128 : index
    %43 = vector.load %arg6[%c2_32, %c128_33] : memref<40x576xf32, #tpu.memory_space<vmem>>, vector<36x192xf32>
    %44 = arith.truncf %43 : vector<36x192xf32> to vector<36x192xbf16>
    %cst_34 = arith.constant dense<0.000000e+00> : vector<36x128xf32>
    %45 = tpu.matmul %44, %38, %cst_34 {dimension_numbers = #tpu.dot_dimension_numbers<[1], [0], [0], [1], [0, 0, 1, 1], [], []>} : vector<36x192xbf16>, vector<192x128xbf16>, vector<36x128xf32> -> vector<36x128xf32>
    %46 = arith.addf %30, %45 : vector<36x128xf32>
    %c2_35 = arith.constant 2 : index
    %c256_36 = arith.constant 256 : index
    %47 = vector.load %arg6[%c2_35, %c256_36] : memref<40x576xf32, #tpu.memory_space<vmem>>, vector<36x192xf32>
    %48 = arith.truncf %47 : vector<36x192xf32> to vector<36x192xbf16>
    %cst_37 = arith.constant dense<0.000000e+00> : vector<36x128xf32>
    %49 = tpu.matmul %48, %38, %cst_37 {dimension_numbers = #tpu.dot_dimension_numbers<[1], [0], [0], [1], [0, 0, 1, 1], [], []>} : vector<36x192xbf16>, vector<192x128xbf16>, vector<36x128xf32> -> vector<36x128xf32>
    %50 = arith.addf %33, %49 : vector<36x128xf32>
    %c2_38 = arith.constant 2 : index
    %c384_39 = arith.constant 384 : index
    %51 = vector.load %arg6[%c2_38, %c384_39] : memref<40x576xf32, #tpu.memory_space<vmem>>, vector<36x192xf32>
    %52 = arith.truncf %51 : vector<36x192xf32> to vector<36x192xbf16>
    %cst_40 = arith.constant dense<0.000000e+00> : vector<36x128xf32>
    %53 = tpu.matmul %52, %38, %cst_40 {dimension_numbers = #tpu.dot_dimension_numbers<[1], [0], [0], [1], [0, 0, 1, 1], [], []>} : vector<36x192xbf16>, vector<192x128xbf16>, vector<36x128xf32> -> vector<36x128xf32>
    %54 = arith.addf %36, %53 : vector<36x128xf32>
    %c2_41 = arith.constant 2 : index
    %c0_42 = arith.constant 0 : index
    %c0_43 = arith.constant 0 : index
    %55 = vector.load %arg4[%c2_41, %c0_42, %c0_43] : memref<3x192x128xbf16, #tpu.memory_space<vmem>>, vector<1x192x128xbf16>
    %56 = vector.shape_cast %55 : vector<1x192x128xbf16> to vector<192x128xbf16>
    %c3 = arith.constant 3 : index
    %c0_44 = arith.constant 0 : index
    %57 = vector.load %arg6[%c3, %c0_44] : memref<40x576xf32, #tpu.memory_space<vmem>>, vector<36x192xf32>
    %58 = arith.truncf %57 : vector<36x192xf32> to vector<36x192xbf16>
    %cst_45 = arith.constant dense<0.000000e+00> : vector<36x128xf32>
    %59 = tpu.matmul %58, %56, %cst_45 {dimension_numbers = #tpu.dot_dimension_numbers<[1], [0], [0], [1], [0, 0, 1, 1], [], []>} : vector<36x192xbf16>, vector<192x128xbf16>, vector<36x128xf32> -> vector<36x128xf32>
    %60 = arith.addf %42, %59 : vector<36x128xf32>
    %c3_46 = arith.constant 3 : index
    %c128_47 = arith.constant 128 : index
    %61 = vector.load %arg6[%c3_46, %c128_47] : memref<40x576xf32, #tpu.memory_space<vmem>>, vector<36x192xf32>
    %62 = arith.truncf %61 : vector<36x192xf32> to vector<36x192xbf16>
    %cst_48 = arith.constant dense<0.000000e+00> : vector<36x128xf32>
    %63 = tpu.matmul %62, %56, %cst_48 {dimension_numbers = #tpu.dot_dimension_numbers<[1], [0], [0], [1], [0, 0, 1, 1], [], []>} : vector<36x192xbf16>, vector<192x128xbf16>, vector<36x128xf32> -> vector<36x128xf32>
    %64 = arith.addf %46, %63 : vector<36x128xf32>
    %c3_49 = arith.constant 3 : index
    %c256_50 = arith.constant 256 : index
    %65 = vector.load %arg6[%c3_49, %c256_50] : memref<40x576xf32, #tpu.memory_space<vmem>>, vector<36x192xf32>
    %66 = arith.truncf %65 : vector<36x192xf32> to vector<36x192xbf16>
    %cst_51 = arith.constant dense<0.000000e+00> : vector<36x128xf32>
    %67 = tpu.matmul %66, %56, %cst_51 {dimension_numbers = #tpu.dot_dimension_numbers<[1], [0], [0], [1], [0, 0, 1, 1], [], []>} : vector<36x192xbf16>, vector<192x128xbf16>, vector<36x128xf32> -> vector<36x128xf32>
    %68 = arith.addf %50, %67 : vector<36x128xf32>
    %c3_52 = arith.constant 3 : index
    %c384_53 = arith.constant 384 : index
    %69 = vector.load %arg6[%c3_52, %c384_53] : memref<40x576xf32, #tpu.memory_space<vmem>>, vector<36x192xf32>
    %70 = arith.truncf %69 : vector<36x192xf32> to vector<36x192xbf16>
    %cst_54 = arith.constant dense<0.000000e+00> : vector<36x128xf32>
    %71 = tpu.matmul %70, %56, %cst_54 {dimension_numbers = #tpu.dot_dimension_numbers<[1], [0], [0], [1], [0, 0, 1, 1], [], []>} : vector<36x192xbf16>, vector<192x128xbf16>, vector<36x128xf32> -> vector<36x128xf32>
    %72 = arith.addf %54, %71 : vector<36x128xf32>
    %73 = vector.extract_strided_slice %60 {offsets = [0, 0], sizes = [16, 128], strides = [1, 1]} : vector<36x128xf32> to vector<16x128xf32>
    %c0_55 = arith.constant 0 : index
    %c0_56 = arith.constant 0 : index
    %c0_57 = arith.constant 0 : index
    %74 = vector.load %arg5[%c0_55, %c0_56, %c0_57] : memref<2x16x512xf32, #tpu.memory_space<vmem>>, vector<1x16x128xf32>
    %75 = vector.shape_cast %74 : vector<1x16x128xf32> to vector<16x128xf32>
    %76 = vector.shape_cast %73 : vector<16x128xf32> to vector<1x16x128xf32>
    tpu.vector_store %arg5[%c0_55, %c0_56, %c0_57], %76 {strides = array<i32>} : memref<2x16x512xf32, #tpu.memory_space<vmem>>, vector<1x16x128xf32>,
    %77 = vector.extract_strided_slice %60 {offsets = [20, 0], sizes = [16, 128], strides = [1, 1]} : vector<36x128xf32> to vector<16x128xf32>
    %c1_58 = arith.constant 1 : index
    %c0_59 = arith.constant 0 : index
    %c0_60 = arith.constant 0 : index
    %78 = vector.load %arg5[%c1_58, %c0_59, %c0_60] : memref<2x16x512xf32, #tpu.memory_space<vmem>>, vector<1x16x128xf32>
    %79 = vector.shape_cast %78 : vector<1x16x128xf32> to vector<16x128xf32>
    %80 = vector.shape_cast %77 : vector<16x128xf32> to vector<1x16x128xf32>
    tpu.vector_store %arg5[%c1_58, %c0_59, %c0_60], %80 {strides = array<i32>} : memref<2x16x512xf32, #tpu.memory_space<vmem>>, vector<1x16x128xf32>,
    %81 = vector.extract_strided_slice %64 {offsets = [0, 0], sizes = [16, 128], strides = [1, 1]} : vector<36x128xf32> to vector<16x128xf32>
    %c0_61 = arith.constant 0 : index
    %c0_62 = arith.constant 0 : index
    %c128_63 = arith.constant 128 : index
    %82 = vector.load %arg5[%c0_61, %c0_62, %c128_63] : memref<2x16x512xf32, #tpu.memory_space<vmem>>, vector<1x16x128xf32>
    %83 = vector.shape_cast %82 : vector<1x16x128xf32> to vector<16x128xf32>
    %84 = vector.shape_cast %81 : vector<16x128xf32> to vector<1x16x128xf32>
    tpu.vector_store %arg5[%c0_61, %c0_62, %c128_63], %84 {strides = array<i32>} : memref<2x16x512xf32, #tpu.memory_space<vmem>>, vector<1x16x128xf32>,
    %85 = vector.extract_strided_slice %64 {offsets = [20, 0], sizes = [16, 128], strides = [1, 1]} : vector<36x128xf32> to vector<16x128xf32>
    %c1_64 = arith.constant 1 : index
    %c0_65 = arith.constant 0 : index
    %c128_66 = arith.constant 128 : index
    %86 = vector.load %arg5[%c1_64, %c0_65, %c128_66] : memref<2x16x512xf32, #tpu.memory_space<vmem>>, vector<1x16x128xf32>
    %87 = vector.shape_cast %86 : vector<1x16x128xf32> to vector<16x128xf32>
    %88 = vector.shape_cast %85 : vector<16x128xf32> to vector<1x16x128xf32>
    tpu.vector_store %arg5[%c1_64, %c0_65, %c128_66], %88 {strides = array<i32>} : memref<2x16x512xf32, #tpu.memory_space<vmem>>, vector<1x16x128xf32>,
    %89 = vector.extract_strided_slice %68 {offsets = [0, 0], sizes = [16, 128], strides = [1, 1]} : vector<36x128xf32> to vector<16x128xf32>
    %c0_67 = arith.constant 0 : index
    %c0_68 = arith.constant 0 : index
    %c256_69 = arith.constant 256 : index
    %90 = vector.load %arg5[%c0_67, %c0_68, %c256_69] : memref<2x16x512xf32, #tpu.memory_space<vmem>>, vector<1x16x128xf32>
    %91 = vector.shape_cast %90 : vector<1x16x128xf32> to vector<16x128xf32>
    %92 = vector.shape_cast %89 : vector<16x128xf32> to vector<1x16x128xf32>
    tpu.vector_store %arg5[%c0_67, %c0_68, %c256_69], %92 {strides = array<i32>} : memref<2x16x512xf32, #tpu.memory_space<vmem>>, vector<1x16x128xf32>,
    %93 = vector.extract_strided_slice %68 {offsets = [20, 0], sizes = [16, 128], strides = [1, 1]} : vector<36x128xf32> to vector<16x128xf32>
    %c1_70 = arith.constant 1 : index
    %c0_71 = arith.constant 0 : index
    %c256_72 = arith.constant 256 : index
    %94 = vector.load %arg5[%c1_70, %c0_71, %c256_72] : memref<2x16x512xf32, #tpu.memory_space<vmem>>, vector<1x16x128xf32>
    %95 = vector.shape_cast %94 : vector<1x16x128xf32> to vector<16x128xf32>
    %96 = vector.shape_cast %93 : vector<16x128xf32> to vector<1x16x128xf32>
    tpu.vector_store %arg5[%c1_70, %c0_71, %c256_72], %96 {strides = array<i32>} : memref<2x16x512xf32, #tpu.memory_space<vmem>>, vector<1x16x128xf32>,
    %97 = vector.extract_strided_slice %72 {offsets = [0, 0], sizes = [16, 128], strides = [1, 1]} : vector<36x128xf32> to vector<16x128xf32>
    %c0_73 = arith.constant 0 : index
    %c0_74 = arith.constant 0 : index
    %c384_75 = arith.constant 384 : index
    %98 = vector.load %arg5[%c0_73, %c0_74, %c384_75] : memref<2x16x512xf32, #tpu.memory_space<vmem>>, vector<1x16x128xf32>
    %99 = vector.shape_cast %98 : vector<1x16x128xf32> to vector<16x128xf32>
    %100 = vector.shape_cast %97 : vector<16x128xf32> to vector<1x16x128xf32>
    tpu.vector_store %arg5[%c0_73, %c0_74, %c384_75], %100 {strides = array<i32>} : memref<2x16x512xf32, #tpu.memory_space<vmem>>, vector<1x16x128xf32>,
    %101 = vector.extract_strided_slice %72 {offsets = [20, 0], sizes = [16, 128], strides = [1, 1]} : vector<36x128xf32> to vector<16x128xf32>
    %c1_76 = arith.constant 1 : index
    %c0_77 = arith.constant 0 : index
    %c384_78 = arith.constant 384 : index
    %102 = vector.load %arg5[%c1_76, %c0_77, %c384_78] : memref<2x16x512xf32, #tpu.memory_space<vmem>>, vector<1x16x128xf32>
    %103 = vector.shape_cast %102 : vector<1x16x128xf32> to vector<16x128xf32>
    %104 = vector.shape_cast %101 : vector<16x128xf32> to vector<1x16x128xf32>
    tpu.vector_store %arg5[%c1_76, %c0_77, %c384_78], %104 {strides = array<i32>} : memref<2x16x512xf32, #tpu.memory_space<vmem>>, vector<1x16x128xf32>,
    return
  }
  func.func @transform_0(%arg0: i32) -> (i32, i32, i32) {
    %c0_i32 = arith.constant 0 : i32
    %c0_i32_0 = arith.constant 0 : i32
    %c0_i32_1 = arith.constant 0 : i32
    %c0_i32_2 = arith.constant 0 : i32
    return %c0_i32, %c0_i32_0, %c0_i32_1 : i32, i32, i32
  }
  func.func @transform_1(%arg0: i32) -> (i32, i32) {
    %c0_i32 = arith.constant 0 : i32
    %c0_i32_0 = arith.constant 0 : i32
    %c0_i32_1 = arith.constant 0 : i32
    return %c0_i32, %c0_i32_0 : i32, i32
  }
  func.func @transform_2(%arg0: i32) -> (i32, i32) {
    %c0_i32 = arith.constant 0 : i32
    %c0_i32_0 = arith.constant 0 : i32
    %c0_i32_1 = arith.constant 0 : i32
    return %c0_i32, %c0_i32_0 : i32, i32
  }
  func.func @transform_3(%arg0: i32) -> (i32, i32, i32) {
    %c0_i32 = arith.constant 0 : i32
    %c0_i32_0 = arith.constant 0 : i32
    %c0_i32_1 = arith.constant 0 : i32
    %c0_i32_2 = arith.constant 0 : i32
    return %c0_i32, %c0_i32_0, %c0_i32_1 : i32, i32, i32
  }
  func.func @transform_4(%arg0: i32) -> (i32, i32, i32) {
    %c0_i32 = arith.constant 0 : i32
    %c0_i32_0 = arith.constant 0 : i32
    %c0_i32_1 = arith.constant 0 : i32
    %c0_i32_2 = arith.constant 0 : i32
    return %c0_i32, %c0_i32_0, %c0_i32_1 : i32, i32, i32
  }
}

</mosaic_0001>

<llo_original>
// kernel: tile.13
$region0: #{tile.13}
  #allocation0 [shape = 's32[1]{0}', space=sflag, size = 0x4, scoped, tag = 'scoped memory for tile.13']
  %s0 = inlined_call_operand.vmem [shape: f32[32], index: 0, kind: input, shape index: {}]
  %s1 = inlined_call_operand.vmem [shape: f32[16,32], index: 1, kind: output, shape index: {}]
  // Predicated region
  $region2: #{tile.13} parent=0 // pred_check
    _
  $region3: #{tile.13} parent=0 // pred_check_branch
    %3 = sbr.rel (0) target = $region5
  $region4: #{tile.13} parent=0 // pred_region
    _
  $region5: #{tile.13} parent=0 // pred_fallthru
    _
  %v4 = vld [vmem:[%s0] ss:$0 sm:$0xff]
  %5 = vst [vmem:[%s1] sm:$0xff] %v4
  %s6 = scalar_lea.vmem %s1, 8
  %7 = vst [vmem:[%s6] sm:$0xff] %v4

// kernel: tile.14
$region0: #{tile.14}
  %s0 = inlined_call_operand.vmem [shape: f32[16,32], index: 0, kind: input, shape index: {}]
  %s1 = inlined_call_operand.vmem [shape: f32[512], index: 1, kind: output, shape index: {}]
  $region1: #{tile.14} parent=0
    #allocation0 [shape = 'u8[4096]{0}', space=vmem, size = 0x1000, scoped, tag = 'scoped mem for output reshape']
    %v2 = vld [vmem:[%s0] ss:$4 sm:$0xf]
    %vm3 = vcmask 261120
    %4 = vst.msk [vmem:[#allocation0] sm:$0xf] %vm3, %v2
    %s5 = scalar_lea.vmem %s0, 3
    %v6 = vld [vmem:[%s5] ss:$4 sm:$0xf]
    %7 = vrot.lane.b32.xlu0 %v6, 96
    %v8 = vpop.permute.xlu0 %7
    %vm9 = vcmask 1048320
    %10 = vst.msk [vmem:[#allocation0] sm:$0xf] %vm9, %v8
    %s11 = scalar_lea.vmem %s0, 2
    %v12 = vld [vmem:[%s11] ss:$4 sm:$0xf]
    %13 = vrot.lane.b32.xlu0 %v12, 64
    %v14 = vpop.permute.xlu0 %13
    %vm15 = vcmask 785920
    %16 = vst.msk [vmem:[#allocation0] sm:$0xf] %vm15, %v14
    %s17 = scalar_lea.vmem %s0, 1
    %v18 = vld [vmem:[%s17] ss:$4 sm:$0xf]
    %19 = vrot.lane.b32.xlu0 %v18, 32
    %v20 = vpop.permute.xlu0 %19
    %vm21 = vcmask 523520
    %22 = vst.msk [vmem:[#allocation0] sm:$0xf] %vm21, %v20
    %s24 = sshllo.u32 0, 4
    %v26 = vld [vmem:[#allocation0] sm:%s24]
    %s27 = sshllo.u32 0, 4
    %28 = vst [vmem:[%s1] sm:%s27] %v26

// kernel: bnconv_pallas.1
$region0: #{bnconv_pallas.1}
  #allocation0 [shape = 'u32[]', space=smem, size = 0x4, offset = 0x4, fixed_abs, tag = 'smem constant byte address 0x4 - core index']
  #allocation1 [shape = 'u32[144,128]{1,0:T(1,128)}', space=vmem, size = 0x12000, scoped, tag = 'internal scratch']
  #allocation2 [shape = 'f32[40,576]{1,0:T(8,128)}', space=vmem, size = 0x19000, scoped, tag = 'scratch operand']
  %s0 = inlined_call_operand.vmem [shape: f32[2,16,576], index: 0, kind: input, shape index: {}]
  %s1 = inlined_call_operand.vmem [shape: f32[1,576], index: 1, kind: input, shape index: {}]
  %s2 = inlined_call_operand.vmem [shape: f32[1,576], index: 2, kind: input, shape index: {}]
  %s3 = inlined_call_operand.vmem [shape: bf16[3,192,128], index: 3, kind: input, shape index: {}]
  %s4 = inlined_call_operand.vmem [shape: f32[2,16,512], index: 4, kind: output, shape index: {}]
  %s5 = sld [smem:[#allocation0]]
  $region26: #{bnconv_pallas.1} parent=0
    _
  %s7 = ssub.s32 1, %s5
  %s8 = scalar_select 0, %s7, %s5
  // Predicated region
  $region2: #{bnconv_pallas.1} parent=0 // pred_check
    _
  $region3: #{bnconv_pallas.1} parent=0 // pred_check_branch
    %10 = sbr.rel (0) target = $region5
  $region4: #{bnconv_pallas.1} parent=0 // pred_region
    _
  $region5: #{bnconv_pallas.1} parent=0 // pred_fallthru
    _
  // Predicated region
  $region6: #{bnconv_pallas.1} parent=0 // pred_check
    _
  $region7: #{bnconv_pallas.1} parent=0 // pred_check_branch
    %12 = sbr.rel (0) target = $region9
  $region8: #{bnconv_pallas.1} parent=0 // pred_region
    _
  $region9: #{bnconv_pallas.1} parent=0 // pred_fallthru
    _
  // Predicated region
  $region10: #{bnconv_pallas.1} parent=0 // pred_check
    _
  $region11: #{bnconv_pallas.1} parent=0 // pred_check_branch
    %14 = sbr.rel (0) target = $region13
  $region12: #{bnconv_pallas.1} parent=0 // pred_region
    _
  $region13: #{bnconv_pallas.1} parent=0 // pred_fallthru
    _
  // Predicated region
  $region14: #{bnconv_pallas.1} parent=0 // pred_check
    _
  $region15: #{bnconv_pallas.1} parent=0 // pred_check_branch
    %16 = sbr.rel (0) target = $region17
  $region16: #{bnconv_pallas.1} parent=0 // pred_region
    _
  $region17: #{bnconv_pallas.1} parent=0 // pred_fallthru
    _
  %v18 = vld [vmem:[%s0] sm:$0xff]
  %v19 = vld [vmem:[%s0 + $0x8] sm:$0xff]
  %v20 = vld [vmem:[%s0 + $0x10] sm:$0xff]
  %v21 = vld [vmem:[%s0 + $0x18] sm:$0xff]
  %v22 = vld [vmem:[%s0 + $0x20] sm:$0xff]
  %v23 = vld [vmem:[%s0 + $0x28] sm:$0xff]
  %v24 = vld [vmem:[%s0 + $0x30] sm:$0xff]
  %v25 = vld [vmem:[%s0 + $0x38] sm:$0xff]
  %v26 = vld [vmem:[%s0 + $0x40] sm:$0xff]
  %v27 = vld [vmem:[%s0 + $0x48] sm:$0xff]
  %v28 = vld [vmem:[%s0 + $0x50] sm:$0xff]
  %v29 = vld [vmem:[%s0 + $0x58] sm:$0xff]
  %v30 = vld [vmem:[%s0 + $0x60] sm:$0xff]
  %v31 = vld [vmem:[%s0 + $0x68] sm:$0xff]
  %v32 = vld [vmem:[%s0 + $0x70] sm:$0xff]
  %v33 = vld [vmem:[%s0 + $0x78] sm:$0xff]
  %v34 = vld [vmem:[%s0 + $0x80] sm:$0xff]
  %v35 = vld [vmem:[%s0 + $0x88] sm:$0xff]
  %v36 = vld [vmem:[%s0 + $0x90] sm:$0xff]
  %v37 = vld [vmem:[%s0 + $0x98] sm:$0xff]
  %v38 = vld [vmem:[%s1] sm:$0x1f]
  %v40 = vlaneseq
  %v41 = vshrl.u32 %v40, 7
  %v42 = vsub.s32 0, %v41
  %v43 = vrot.slane %v38, %v42
  %v44 = vlaneseq
  %v45 = vshrl.u32 %v44, 7
  %v46 = vsub.s32 1, %v45
  %v47 = vrot.slane %v38, %v46
  %v48 = vlaneseq
  %v49 = vshrl.u32 %v48, 7
  %v50 = vsub.s32 2, %v49
  %v51 = vrot.slane %v38, %v50
  %v52 = vlaneseq
  %v53 = vshrl.u32 %v52, 7
  %v54 = vsub.s32 3, %v53
  %v55 = vrot.slane %v38, %v54
  %v56 = vlaneseq
  %v57 = vshrl.u32 %v56, 7
  %v58 = vsub.s32 4, %v57
  %v59 = vrot.slane %v38, %v58
  %v65 = vmul.f32 %v18, %v43
  %v66 = vmul.f32 %v19, %v47
  %v67 = vmul.f32 %v20, %v51
  %v68 = vmul.f32 %v21, %v55
  %v69 = vmul.f32 %v22, %v59
  %v70 = vmul.f32 %v23, %v43
  %v71 = vmul.f32 %v24, %v47
  %v72 = vmul.f32 %v25, %v51
  %v73 = vmul.f32 %v26, %v55
  %v74 = vmul.f32 %v27, %v59
  %v75 = vmul.f32 %v28, %v43
  %v76 = vmul.f32 %v29, %v47
  %v77 = vmul.f32 %v30, %v51
  %v78 = vmul.f32 %v31, %v55
  %v79 = vmul.f32 %v32, %v59
  %v80 = vmul.f32 %v33, %v43
  %v81 = vmul.f32 %v34, %v47
  %v82 = vmul.f32 %v35, %v51
  %v83 = vmul.f32 %v36, %v55
  %v84 = vmul.f32 %v37, %v59
  %v85 = vld [vmem:[%s2] sm:$0x1f]
  %v87 = vlaneseq
  %v88 = vshrl.u32 %v87, 7
  %v89 = vsub.s32 0, %v88
  %v90 = vrot.slane %v85, %v89
  %v91 = vlaneseq
  %v92 = vshrl.u32 %v91, 7
  %v93 = vsub.s32 1, %v92
  %v94 = vrot.slane %v85, %v93
  %v95 = vlaneseq
  %v96 = vshrl.u32 %v95, 7
  %v97 = vsub.s32 2, %v96
  %v98 = vrot.slane %v85, %v97
  %v99 = vlaneseq
  %v100 = vshrl.u32 %v99, 7
  %v101 = vsub.s32 3, %v100
  %v102 = vrot.slane %v85, %v101
  %v103 = vlaneseq
  %v104 = vshrl.u32 %v103, 7
  %v105 = vsub.s32 4, %v104
  %v106 = vrot.slane %v85, %v105
  %v112 = vadd.f32 %v65, %v90
  %v113 = vadd.f32 %v66, %v94
  %v114 = vadd.f32 %v67, %v98
  %v115 = vadd.f32 %v68, %v102
  %v116 = vadd.f32 %v69, %v106
  %v117 = vadd.f32 %v70, %v90
  %v118 = vadd.f32 %v71, %v94
  %v119 = vadd.f32 %v72, %v98
  %v120 = vadd.f32 %v73, %v102
  %v121 = vadd.f32 %v74, %v106
  %v122 = vadd.f32 %v75, %v90
  %v123 = vadd.f32 %v76, %v94
  %v124 = vadd.f32 %v77, %v98
  %v125 = vadd.f32 %v78, %v102
  %v126 = vadd.f32 %v79, %v106
  %v127 = vadd.f32 %v80, %v90
  %v128 = vadd.f32 %v81, %v94
  %v129 = vadd.f32 %v82, %v98
  %v130 = vadd.f32 %v83, %v102
  %v131 = vadd.f32 %v84, %v106
  %v132 = vmax.f32 %v112, 0.0
  %v133 = vmax.f32 %v113, 0.0
  %v134 = vmax.f32 %v114, 0.0
  %v135 = vmax.f32 %v115, 0.0
  %v136 = vmax.f32 %v116, 0.0
  %v137 = vmax.f32 %v117, 0.0
  %v138 = vmax.f32 %v118, 0.0
  %v139 = vmax.f32 %v119, 0.0
  %v140 = vmax.f32 %v120, 0.0
  %v141 = vmax.f32 %v121, 0.0
  %v142 = vmax.f32 %v122, 0.0
  %v143 = vmax.f32 %v123, 0.0
  %v144 = vmax.f32 %v124, 0.0
  %v145 = vmax.f32 %v125, 0.0
  %v146 = vmax.f32 %v126, 0.0
  %v147 = vmax.f32 %v127, 0.0
  %v148 = vmax.f32 %v128, 0.0
  %v149 = vmax.f32 %v129, 0.0
  %v150 = vmax.f32 %v130, 0.0
  %v151 = vmax.f32 %v131, 0.0
  %152 = vst [vmem:[#allocation2] sm:$0x3] 0.0
  %153 = vst [vmem:[#allocation2 + $0x8] sm:$0x3] 0.0
  %154 = vst [vmem:[#allocation2 + $0x10] sm:$0x3] 0.0
  %155 = vst [vmem:[#allocation2 + $0x18] sm:$0x3] 0.0
  %vm156 = vcmask 517120
  %157 = vst.msk [vmem:[#allocation2 + $0x20] sm:$0x3] %vm156, 0.0
  %158 = vst [vmem:[#allocation2 + $0x50] sm:$0xc] 0.0
  %159 = vst [vmem:[#allocation2 + $0x58] sm:$0xc] 0.0
  %160 = vst [vmem:[#allocation2 + $0x60] sm:$0xc] 0.0
  %161 = vst [vmem:[#allocation2 + $0x68] sm:$0xc] 0.0
  %vm162 = vcmask 519170
  %163 = vst.msk [vmem:[#allocation2 + $0x70] sm:$0xc] %vm162, 0.0
  %vm174 = vcmask 1041408
  %v175 = vrot.slane %v132, 6
  %v176 = vrot.slane %v133, 6
  %v177 = vrot.slane %v134, 6
  %v178 = vrot.slane %v135, 6
  %v179 = vrot.slane %v136, 6
  %v180 = vrot.slane %v137, 6
  %v181 = vsel %vm174, %v175, %v180
  %v182 = vrot.slane %v138, 6
  %v183 = vsel %vm174, %v176, %v182
  %v184 = vrot.slane %v139, 6
  %v185 = vsel %vm174, %v177, %v184
  %v186 = vrot.slane %v140, 6
  %v187 = vsel %vm174, %v178, %v186
  %v188 = vrot.slane %v141, 6
  %v189 = vsel %vm174, %v179, %v188
  %205 = vst [vmem:[#allocation2] sm:$0xfc] %v175
  %206 = vst [vmem:[#allocation2 + $0x8] sm:$0xfc] %v176
  %207 = vst [vmem:[#allocation2 + $0x10] sm:$0xfc] %v177
  %208 = vst [vmem:[#allocation2 + $0x18] sm:$0xfc] %v178
  %vm209 = vcmask 523266
  %210 = vst.msk [vmem:[#allocation2 + $0x20] sm:$0xfc] %vm209, %v179
  %211 = vst [vmem:[#allocation2 + $0x28] sm:$0xff] %v181
  %212 = vst [vmem:[#allocation2 + $0x30] sm:$0xff] %v183
  %213 = vst [vmem:[#allocation2 + $0x38] sm:$0xff] %v185
  %214 = vst [vmem:[#allocation2 + $0x40] sm:$0xff] %v187
  %vm215 = vcmask 523264
  %216 = vst.msk [vmem:[#allocation2 + $0x48] sm:$0xff] %vm215, %v189
  %217 = vst [vmem:[#allocation2 + $0x50] sm:$0x3] %v180
  %218 = vst [vmem:[#allocation2 + $0x58] sm:$0x3] %v182
  %219 = vst [vmem:[#allocation2 + $0x60] sm:$0x3] %v184
  %220 = vst [vmem:[#allocation2 + $0x68] sm:$0x3] %v186
  %221 = vst.msk [vmem:[#allocation2 + $0x70] sm:$0x3] %vm156, %v188
  %222 = vst [vmem:[#allocation2 + $0x50] sm:$0x30] 0.0
  %223 = vst [vmem:[#allocation2 + $0x58] sm:$0x30] 0.0
  %224 = vst [vmem:[#allocation2 + $0x60] sm:$0x30] 0.0
  %225 = vst [vmem:[#allocation2 + $0x68] sm:$0x30] 0.0
  %vm226 = vcmask 521220
  %227 = vst.msk [vmem:[#allocation2 + $0x70] sm:$0x30] %vm226, 0.0
  %228 = vst [vmem:[#allocation2 + $0xa0] sm:$0xc0] 0.0
  %229 = vst [vmem:[#allocation2 + $0xa8] sm:$0xc0] 0.0
  %230 = vst [vmem:[#allocation2 + $0xb0] sm:$0xc0] 0.0
  %231 = vst [vmem:[#allocation2 + $0xb8] sm:$0xc0] 0.0
  %vm232 = vcmask 523270
  %233 = vst.msk [vmem:[#allocation2 + $0xc0] sm:$0xc0] %vm232, 0.0
  %vm244 = vcmask 1045504
  %v245 = vrot.slane %v142, 2
  %v246 = vrot.slane %v143, 2
  %v247 = vrot.slane %v144, 2
  %v248 = vrot.slane %v145, 2
  %v249 = vrot.slane %v146, 2
  %v250 = vrot.slane %v147, 2
  %v251 = vsel %vm244, %v245, %v250
  %v252 = vrot.slane %v148, 2
  %v253 = vsel %vm244, %v246, %v252
  %v254 = vrot.slane %v149, 2
  %v255 = vsel %vm244, %v247, %v254
  %v256 = vrot.slane %v150, 2
  %v257 = vsel %vm244, %v248, %v256
  %v258 = vrot.slane %v151, 2
  %v259 = vsel %vm244, %v249, %v258
  %275 = vst [vmem:[#allocation2 + $0x50] sm:$0xc0] %v245
  %276 = vst [vmem:[#allocation2 + $0x58] sm:$0xc0] %v246
  %277 = vst [vmem:[#allocation2 + $0x60] sm:$0xc0] %v247
  %278 = vst [vmem:[#allocation2 + $0x68] sm:$0xc0] %v248
  %279 = vst.msk [vmem:[#allocation2 + $0x70] sm:$0xc0] %vm232, %v249
  %280 = vst [vmem:[#allocation2 + $0x78] sm:$0xff] %v251
  %281 = vst [vmem:[#allocation2 + $0x80] sm:$0xff] %v253
  %282 = vst [vmem:[#allocation2 + $0x88] sm:$0xff] %v255
  %283 = vst [vmem:[#allocation2 + $0x90] sm:$0xff] %v257
  %284 = vst.msk [vmem:[#allocation2 + $0x98] sm:$0xff] %vm215, %v259
  %285 = vst [vmem:[#allocation2 + $0xa0] sm:$0x3f] %v250
  %286 = vst [vmem:[#allocation2 + $0xa8] sm:$0x3f] %v252
  %287 = vst [vmem:[#allocation2 + $0xb0] sm:$0x3f] %v254
  %288 = vst [vmem:[#allocation2 + $0xb8] sm:$0x3f] %v256
  %vm289 = vcmask 521216
  %290 = vst.msk [vmem:[#allocation2 + $0xc0] sm:$0x3f] %vm289, %v258
  %v291 = vld [vmem:[%s3] sm:$0xf]
  %v292 = vld [vmem:[%s3 + $0x4] sm:$0xf]
  %v293 = vld [vmem:[%s3 + $0x8] sm:$0xf]
  %v294 = vld [vmem:[%s3 + $0xc] sm:$0xf]
  %v295 = vld [vmem:[%s3 + $0x10] sm:$0xf]
  %v296 = vld [vmem:[%s3 + $0x14] sm:$0xf]
  %v297 = vld [vmem:[%s3 + $0x18] sm:$0xf]
  %v298 = vld [vmem:[%s3 + $0x1c] sm:$0xf]
  %v299 = vld [vmem:[%s3 + $0x20] sm:$0xf]
  %v300 = vld [vmem:[%s3 + $0x24] sm:$0xf]
  %v301 = vld [vmem:[%s3 + $0x28] sm:$0xf]
  %v302 = vld [vmem:[%s3 + $0x2c] sm:$0xf]
  %v303 = vld [vmem:[%s3 + $0x30] sm:$0xf]
  %v304 = vld [vmem:[%s3 + $0x34] sm:$0xf]
  %v305 = vld [vmem:[%s3 + $0x38] sm:$0xf]
  %v306 = vld [vmem:[%s3 + $0x3c] sm:$0xf]
  %v307 = vld [vmem:[%s3 + $0x40] sm:$0xf]
  %v308 = vld [vmem:[%s3 + $0x44] sm:$0xf]
  %v309 = vld [vmem:[%s3 + $0x48] sm:$0xf]
  %v310 = vld [vmem:[%s3 + $0x4c] sm:$0xf]
  %v311 = vld [vmem:[%s3 + $0x50] sm:$0xf]
  %v312 = vld [vmem:[%s3 + $0x54] sm:$0xf]
  %v313 = vld [vmem:[%s3 + $0x58] sm:$0xf]
  %v314 = vld [vmem:[%s3 + $0x5c] sm:$0xf]
  %v315 = vld [vmem:[#allocation2] sm:$0xfe]
  %v316 = vld [vmem:[#allocation2 + $0x8] sm:$0xfe]
  %v317 = vld [vmem:[#allocation2 + $0x28] sm:$0xff]
  %v318 = vld [vmem:[#allocation2 + $0x30] sm:$0xff]
  %v319 = vld [vmem:[#allocation2 + $0x50] sm:$0xff]
  %v320 = vld [vmem:[#allocation2 + $0x58] sm:$0xff]
  %v321 = vld [vmem:[#allocation2 + $0x78] sm:$0xff]
  %v322 = vld [vmem:[#allocation2 + $0x80] sm:$0xff]
  %v323 = vld [vmem:[#allocation2 + $0xa0] sm:$0x1f]
  %v324 = vld [vmem:[#allocation2 + $0xa8] sm:$0x1f]
  %v325 = vpack.c.bf16 %v317, %v315
  %v326 = vpack.c.bf16 %v318, %v316
  %v327 = vpack.c.bf16 %v321, %v319
  %v328 = vpack.c.bf16 %v322, %v320
  %v329 = vpack.c.bf16 %v323, %v323
  %v330 = vpack.c.bf16 %v324, %v324
  %v331 = vld [vmem:[#allocation2 + $0x10] sm:$0xfe]
  %v332 = vld [vmem:[#allocation2 + $0x38] sm:$0xff]
  %v333 = vld [vmem:[#allocation2 + $0x60] sm:$0xff]
  %v334 = vld [vmem:[#allocation2 + $0x88] sm:$0xff]
  %v335 = vld [vmem:[#allocation2 + $0xb0] sm:$0x1f]
  %v336 = vpack.c.bf16 %v332, %v331
  %v337 = vpack.c.bf16 %v334, %v333
  %v338 = vpack.c.bf16 %v335, %v335
  %v339 = vld [vmem:[#allocation2 + $0x18] sm:$0xfe]
  %v340 = vld [vmem:[#allocation2 + $0x40] sm:$0xff]
  %v341 = vld [vmem:[#allocation2 + $0x68] sm:$0xff]
  %v342 = vld [vmem:[#allocation2 + $0x90] sm:$0xff]
  %v343 = vld [vmem:[#allocation2 + $0xb8] sm:$0x1f]
  %v344 = vpack.c.bf16 %v340, %v339
  %v345 = vpack.c.bf16 %v342, %v341
  %v346 = vpack.c.bf16 %v343, %v343
  %v347 = vld [vmem:[#allocation2 + $0x20] sm:$0xfe]
  %v348 = vld [vmem:[#allocation2 + $0x48] sm:$0xff]
  %v349 = vld [vmem:[#allocation2 + $0x70] sm:$0xff]
  %v350 = vld [vmem:[#allocation2 + $0x98] sm:$0xff]
  %v351 = vld [vmem:[#allocation2 + $0xc0] sm:$0x1f]
  %v352 = vpack.c.bf16 %v348, %v347
  %v353 = vpack.c.bf16 %v350, %v349
  %v354 = vpack.c.bf16 %v351, %v351
  %s355 = scalar_lea.vmem %s3, 96
  %v356 = vld [vmem:[%s355] sm:$0xf]
  %v357 = vld [vmem:[%s355 + $0x4] sm:$0xf]
  %v358 = vld [vmem:[%s355 + $0x8] sm:$0xf]
  %v359 = vld [vmem:[%s355 + $0xc] sm:$0xf]
  %v360 = vld [vmem:[%s355 + $0x10] sm:$0xf]
  %v361 = vld [vmem:[%s355 + $0x14] sm:$0xf]
  %v362 = vld [vmem:[%s355 + $0x18] sm:$0xf]
  %v363 = vld [vmem:[%s355 + $0x1c] sm:$0xf]
  %v364 = vld [vmem:[%s355 + $0x20] sm:$0xf]
  %v365 = vld [vmem:[%s355 + $0x24] sm:$0xf]
  %v366 = vld [vmem:[%s355 + $0x28] sm:$0xf]
  %v367 = vld [vmem:[%s355 + $0x2c] sm:$0xf]
  %v368 = vld [vmem:[%s355 + $0x30] sm:$0xf]
  %v369 = vld [vmem:[%s355 + $0x34] sm:$0xf]
  %v370 = vld [vmem:[%s355 + $0x38] sm:$0xf]
  %v371 = vld [vmem:[%s355 + $0x3c] sm:$0xf]
  %v372 = vld [vmem:[%s355 + $0x40] sm:$0xf]
  %v373 = vld [vmem:[%s355 + $0x44] sm:$0xf]
  %v374 = vld [vmem:[%s355 + $0x48] sm:$0xf]
  %v375 = vld [vmem:[%s355 + $0x4c] sm:$0xf]
  %v376 = vld [vmem:[%s355 + $0x50] sm:$0xf]
  %v377 = vld [vmem:[%s355 + $0x54] sm:$0xf]
  %v378 = vld [vmem:[%s355 + $0x58] sm:$0xf]
  %v379 = vld [vmem:[%s355 + $0x5c] sm:$0xf]
  %v380 = vld [vmem:[#allocation2] sm:$0xfc]
  %v381 = vld [vmem:[#allocation2 + $0x8] sm:$0xfc]
  %v382 = vld [vmem:[#allocation2 + $0xa0] sm:$0x3f]
  %v383 = vld [vmem:[#allocation2 + $0xa8] sm:$0x3f]
  %v384 = vpack.c.bf16 %v317, %v380
  %v385 = vpack.c.bf16 %v318, %v381
  %v386 = vpack.c.bf16 %v382, %v382
  %v387 = vpack.c.bf16 %v383, %v383
  %vm394 = vcmask 1046528
  %v395 = vrot.slane %v384, 1
  %v396 = vrot.slane %v327, 1
  %v397 = vsel %vm394, %v395, %v396
  %v398 = vrot.slane %v385, 1
  %v399 = vrot.slane %v328, 1
  %v400 = vsel %vm394, %v398, %v399
  %v401 = vrot.slane %v386, 1
  %v402 = vsel %vm394, %v396, %v401
  %v403 = vrot.slane %v387, 1
  %v404 = vsel %vm394, %v399, %v403
  %v432 = vunpack.c.l.b16 %v356
  %v433 = vunpack.c.l.b16 %v357
  %v434 = vunpack.c.l.b16 %v358
  %v435 = vunpack.c.l.b16 %v359
  %v436 = vunpack.c.l.b16 %v360
  %v437 = vunpack.c.l.b16 %v361
  %v438 = vunpack.c.l.b16 %v362
  %v439 = vunpack.c.l.b16 %v363
  %v440 = vunpack.c.l.b16 %v364
  %v441 = vunpack.c.l.b16 %v365
  %v442 = vunpack.c.l.b16 %v366
  %v443 = vunpack.c.l.b16 %v367
  %v444 = vunpack.c.l.b16 %v368
  %v445 = vunpack.c.l.b16 %v369
  %v446 = vunpack.c.l.b16 %v370
  %v447 = vunpack.c.l.b16 %v371
  %v448 = vunpack.c.l.b16 %v372
  %v449 = vunpack.c.l.b16 %v373
  %v450 = vunpack.c.l.b16 %v374
  %v451 = vunpack.c.l.b16 %v375
  %v452 = vunpack.c.l.b16 %v376
  %v453 = vunpack.c.l.b16 %v377
  %v454 = vunpack.c.l.b16 %v378
  %v455 = vunpack.c.l.b16 %v379
  %v456 = vpack.c.b16 %v433, %v432
  %v457 = vpack.c.b16 %v435, %v434
  %v458 = vpack.c.b16 %v437, %v436
  %v459 = vpack.c.b16 %v439, %v438
  %v460 = vpack.c.b16 %v441, %v440
  %v461 = vpack.c.b16 %v443, %v442
  %v462 = vpack.c.b16 %v445, %v444
  %v463 = vpack.c.b16 %v447, %v446
  %v464 = vpack.c.b16 %v449, %v448
  %v465 = vpack.c.b16 %v451, %v450
  %v466 = vpack.c.b16 %v453, %v452
  %v467 = vpack.c.b16 %v455, %v454
  %v481 = vsel %vm215, %v400, 0
  %v484 = vsel %vm215, %v404, 0
  %v487 = vsel %vm215, %v403, 0
  %489 = vmatprep.subr.bf16.mxu0 0
  %490 = vmatpush1.bf16.msra.mxu0 %v456
  %491 = vmatprep.subr.bf16.mxu0 0
  %492 = vmatpush1.bf16.msra.mxu0 %v457
  %493 = vmatprep.subr.bf16.mxu0 0
  %494 = vmatpush1.bf16.msra.mxu0 %v458
  %495 = vmatprep.subr.bf16.mxu0 0
  %496 = vmatpush1.bf16.msra.mxu0 %v459
  %497 = vmatprep.subr.bf16.mxu0 0
  %498 = vmatpush1.bf16.msra.mxu0 %v460
  %499 = vmatprep.subr.bf16.mxu0 0
  %500 = vmatpush1.bf16.msra.mxu0 %v461
  %501 = vmatprep.subr.bf16.mxu0 0
  %502 = vmatpush1.bf16.msra.mxu0 %v462
  %503 = vmatprep.subr.bf16.mxu0 0
  %504 = vmatpush1.bf16.msra.mxu0 %v463
  %505 = vmatprep.subr.bf16.mxu0 0
  %506 = vmatpush1.bf16.msra.mxu0 %v464
  %507 = vmatprep.subr.bf16.mxu0 0
  %508 = vmatpush1.bf16.msra.mxu0 %v465
  %509 = vmatprep.subr.bf16.mxu0 0
  %510 = vmatpush1.bf16.msra.mxu0 %v466
  %511 = vmatprep.subr.bf16.mxu0 0
  %512 = vmatpush1.bf16.msra.mxu0 %v467
  %513 = vmatprep.subr.bf16.mxu0 0
  %514 = vmatpush1.bf16.msra.mxu0 0
  %515 = vmatprep.subr.bf16.mxu0 0
  %516 = vmatpush1.bf16.msra.mxu0 0
  %517 = vmatprep.subr.bf16.mxu0 0
  %518 = vmatpush1.bf16.msra.mxu0 0
  %519 = vmatprep.subr.bf16.mxu0 0
  %520 = vmatpush1.bf16.msra.mxu0 0
  %521 = vmatprep.mubr.bf16.mxu0 %v481
  %522 = vmatmul.mubr.bf16.gmra.mrb[0].mxu0 %v397
  %v523 = vpop.f32.mrb[0].mxu0
  %v524 = vadd.f32 0.0, %v523
  %v525 = vpop.f32.mrb[0].mxu0
  %v526 = vpop.f32.mrb[0].mxu0
  %v527 = vadd.f32 0.0, %v526
  %v528 = vpop.f32.mrb[0].mxu0
  %529 = vmatprep.mubr.bf16.mxu0 %v484
  %530 = vmatmul.mubr.bf16.gmra.mrb[0].mxu0 %v402
  %v531 = vpop.f32.mrb[0].mxu0
  %v532 = vadd.f32 0.0, %v531
  %v533 = vpop.f32.mrb[0].mxu0
  %v534 = vpop.f32.mrb[0].mxu0
  %v535 = vadd.f32 0.0, %v534
  %v536 = vpop.f32.mrb[0].mxu0
  %537 = vmatprep.mubr.bf16.mxu0 %v487
  %538 = vmatmul.mubr.bf16.gmra.mrb[0].mxu0 %v401
  %v539 = vpop.f32.mrb[0].mxu0
  %v540 = vadd.f32 0.0, %v539
  %v541 = vpop.f32.mrb[0].mxu0
  %v542 = vpop.f32.mrb[0].mxu0
  %v543 = vpop.f32.mrb[0].mxu0
  %544 = vdwg.mxu0
  %vm545 = vsmask.f32 7424
  %v547 = vshrl.u32 %v325, 16
  %v549 = vshll.u32 %v325, 16
  %v551 = vrot.slane %v549, 1
  %v552 = vor.u32 %v547, %v551
  %v554 = vshll.u32 %v327, 16
  %v556 = vrot.slane %v554, 1
  %v557 = vsel %vm545, %v552, %v556
  %v559 = vshrl.u32 %v326, 16
  %v561 = vshll.u32 %v326, 16
  %v563 = vrot.slane %v561, 1
  %v564 = vor.u32 %v559, %v563
  %v566 = vshll.u32 %v328, 16
  %v568 = vrot.slane %v566, 1
  %v569 = vsel %vm545, %v564, %v568
  %v570 = vshrl.u32 %v327, 16
  %v572 = vor.u32 %v570, %v556
  %v574 = vshll.u32 %v329, 16
  %v576 = vrot.slane %v574, 1
  %v577 = vsel %vm545, %v572, %v576
  %v578 = vshrl.u32 %v328, 16
  %v580 = vor.u32 %v578, %v568
  %v582 = vshll.u32 %v330, 16
  %v584 = vrot.slane %v582, 1
  %v585 = vsel %vm545, %v580, %v584
  %v586 = vshrl.u32 %v329, 16
  %v588 = vor.u32 %v586, %v576
  %v589 = vshrl.u32 %v330, 16
  %v591 = vor.u32 %v589, %v584
  %v619 = vunpack.c.l.b16 %v291
  %v620 = vunpack.c.l.b16 %v292
  %v621 = vunpack.c.l.b16 %v293
  %v622 = vunpack.c.l.b16 %v294
  %v623 = vunpack.c.l.b16 %v295
  %v624 = vunpack.c.l.b16 %v296
  %v625 = vunpack.c.l.b16 %v297
  %v626 = vunpack.c.l.b16 %v298
  %v627 = vunpack.c.l.b16 %v299
  %v628 = vunpack.c.l.b16 %v300
  %v629 = vunpack.c.l.b16 %v301
  %v630 = vunpack.c.l.b16 %v302
  %v631 = vunpack.c.l.b16 %v303
  %v632 = vunpack.c.l.b16 %v304
  %v633 = vunpack.c.l.b16 %v305
  %v634 = vunpack.c.l.b16 %v306
  %v635 = vunpack.c.l.b16 %v307
  %v636 = vunpack.c.l.b16 %v308
  %v637 = vunpack.c.l.b16 %v309
  %v638 = vunpack.c.l.b16 %v310
  %v639 = vunpack.c.l.b16 %v311
  %v640 = vunpack.c.l.b16 %v312
  %v641 = vunpack.c.l.b16 %v313
  %v642 = vunpack.c.l.b16 %v314
  %v643 = vpack.c.b16 %v620, %v619
  %v644 = vpack.c.b16 %v622, %v621
  %v645 = vpack.c.b16 %v624, %v623
  %v646 = vpack.c.b16 %v626, %v625
  %v647 = vpack.c.b16 %v628, %v627
  %v648 = vpack.c.b16 %v630, %v629
  %v649 = vpack.c.b16 %v632, %v631
  %v650 = vpack.c.b16 %v634, %v633
  %v651 = vpack.c.b16 %v636, %v635
  %v652 = vpack.c.b16 %v638, %v637
  %v653 = vpack.c.b16 %v640, %v639
  %v654 = vpack.c.b16 %v642, %v641
  %v668 = vsel %vm215, %v569, 0
  %v671 = vsel %vm215, %v585, 0
  %v674 = vsel %vm215, %v591, 0
  %676 = vmatprep.subr.bf16.mxu0 0
  %677 = vmatpush1.bf16.msra.mxu0 %v643
  %678 = vmatprep.subr.bf16.mxu0 0
  %679 = vmatpush1.bf16.msra.mxu0 %v644
  %680 = vmatprep.subr.bf16.mxu0 0
  %681 = vmatpush1.bf16.msra.mxu0 %v645
  %682 = vmatprep.subr.bf16.mxu0 0
  %683 = vmatpush1.bf16.msra.mxu0 %v646
  %684 = vmatprep.subr.bf16.mxu0 0
  %685 = vmatpush1.bf16.msra.mxu0 %v647
  %686 = vmatprep.subr.bf16.mxu0 0
  %687 = vmatpush1.bf16.msra.mxu0 %v648
  %688 = vmatprep.subr.bf16.mxu0 0
  %689 = vmatpush1.bf16.msra.mxu0 %v649
  %690 = vmatprep.subr.bf16.mxu0 0
  %691 = vmatpush1.bf16.msra.mxu0 %v650
  %692 = vmatprep.subr.bf16.mxu0 0
  %693 = vmatpush1.bf16.msra.mxu0 %v651
  %694 = vmatprep.subr.bf16.mxu0 0
  %695 = vmatpush1.bf16.msra.mxu0 %v652
  %696 = vmatprep.subr.bf16.mxu0 0
  %697 = vmatpush1.bf16.msra.mxu0 %v653
  %698 = vmatprep.subr.bf16.mxu0 0
  %699 = vmatpush1.bf16.msra.mxu0 %v654
  %700 = vmatprep.subr.bf16.mxu0 0
  %701 = vmatpush1.bf16.msra.mxu0 0
  %702 = vmatprep.subr.bf16.mxu0 0
  %703 = vmatpush1.bf16.msra.mxu0 0
  %704 = vmatprep.subr.bf16.mxu0 0
  %705 = vmatpush1.bf16.msra.mxu0 0
  %706 = vmatprep.subr.bf16.mxu0 0
  %707 = vmatpush1.bf16.msra.mxu0 0
  %708 = vmatprep.mubr.bf16.mxu0 %v668
  %709 = vmatmul.mubr.bf16.gmra.mrb[0].mxu0 %v557
  %v710 = vpop.f32.mrb[0].mxu0
  %v711 = vadd.f32 %v524, %v710
  %v712 = vpop.f32.mrb[0].mxu0
  %v713 = vpop.f32.mrb[0].mxu0
  %v714 = vadd.f32 %v527, %v713
  %v715 = vpop.f32.mrb[0].mxu0
  %716 = vmatprep.mubr.bf16.mxu0 %v671
  %717 = vmatmul.mubr.bf16.gmra.mrb[0].mxu0 %v577
  %v718 = vpop.f32.mrb[0].mxu0
  %v719 = vadd.f32 %v532, %v718
  %v720 = vpop.f32.mrb[0].mxu0
  %v721 = vpop.f32.mrb[0].mxu0
  %v722 = vadd.f32 %v535, %v721
  %v723 = vpop.f32.mrb[0].mxu0
  %724 = vmatprep.mubr.bf16.mxu0 %v674
  %725 = vmatmul.mubr.bf16.gmra.mrb[0].mxu0 %v588
  %v726 = vpop.f32.mrb[0].mxu0
  %v727 = vadd.f32 %v540, %v726
  %v728 = vpop.f32.mrb[0].mxu0
  %v729 = vpop.f32.mrb[0].mxu0
  %v730 = vpop.f32.mrb[0].mxu0
  %731 = vdwg.mxu0
  %v732 = vld [vmem:[#allocation2 + $0x8] sm:$0xfc]
  %v733 = vld [vmem:[#allocation2 + $0x10] sm:$0xfc]
  %v734 = vld [vmem:[#allocation2 + $0xa8] sm:$0x3f]
  %v735 = vld [vmem:[#allocation2 + $0xb0] sm:$0x3f]
  %v736 = vpack.c.bf16 %v318, %v732
  %v737 = vpack.c.bf16 %v332, %v733
  %v738 = vpack.c.bf16 %v734, %v734
  %v739 = vpack.c.bf16 %v735, %v735
  %v745 = vrot.slane %v736, 1
  %v746 = vsel %vm394, %v745, %v399
  %v747 = vrot.slane %v737, 1
  %v748 = vrot.slane %v337, 1
  %v749 = vsel %vm394, %v747, %v748
  %v750 = vrot.slane %v738, 1
  %v751 = vsel %vm394, %v399, %v750
  %v752 = vrot.slane %v739, 1
  %v753 = vsel %vm394, %v748, %v752
  %v758 = vsel %vm215, %v749, 0
  %v761 = vsel %vm215, %v753, 0
  %v764 = vsel %vm215, %v752, 0
  %766 = vmatprep.subr.bf16.mxu0 0
  %767 = vmatpush1.bf16.msra.mxu0 %v456
  %768 = vmatprep.subr.bf16.mxu0 0
  %769 = vmatpush1.bf16.msra.mxu0 %v457
  %770 = vmatprep.subr.bf16.mxu0 0
  %771 = vmatpush1.bf16.msra.mxu0 %v458
  %772 = vmatprep.subr.bf16.mxu0 0
  %773 = vmatpush1.bf16.msra.mxu0 %v459
  %774 = vmatprep.subr.bf16.mxu0 0
  %775 = vmatpush1.bf16.msra.mxu0 %v460
  %776 = vmatprep.subr.bf16.mxu0 0
  %777 = vmatpush1.bf16.msra.mxu0 %v461
  %778 = vmatprep.subr.bf16.mxu0 0
  %779 = vmatpush1.bf16.msra.mxu0 %v462
  %780 = vmatprep.subr.bf16.mxu0 0
  %781 = vmatpush1.bf16.msra.mxu0 %v463
  %782 = vmatprep.subr.bf16.mxu0 0
  %783 = vmatpush1.bf16.msra.mxu0 %v464
  %784 = vmatprep.subr.bf16.mxu0 0
  %785 = vmatpush1.bf16.msra.mxu0 %v465
  %786 = vmatprep.subr.bf16.mxu0 0
  %787 = vmatpush1.bf16.msra.mxu0 %v466
  %788 = vmatprep.subr.bf16.mxu0 0
  %789 = vmatpush1.bf16.msra.mxu0 %v467
  %790 = vmatprep.subr.bf16.mxu0 0
  %791 = vmatpush1.bf16.msra.mxu0 0
  %792 = vmatprep.subr.bf16.mxu0 0
  %793 = vmatpush1.bf16.msra.mxu0 0
  %794 = vmatprep.subr.bf16.mxu0 0
  %795 = vmatpush1.bf16.msra.mxu0 0
  %796 = vmatprep.subr.bf16.mxu0 0
  %797 = vmatpush1.bf16.msra.mxu0 0
  %798 = vmatprep.mubr.bf16.mxu0 %v758
  %799 = vmatmul.mubr.bf16.gmra.mrb[0].mxu0 %v746
  %v800 = vpop.f32.mrb[0].mxu0
  %v801 = vadd.f32 0.0, %v800
  %v802 = vpop.f32.mrb[0].mxu0
  %v803 = vpop.f32.mrb[0].mxu0
  %v804 = vadd.f32 0.0, %v803
  %v805 = vpop.f32.mrb[0].mxu0
  %806 = vmatprep.mubr.bf16.mxu0 %v761
  %807 = vmatmul.mubr.bf16.gmra.mrb[0].mxu0 %v751
  %v808 = vpop.f32.mrb[0].mxu0
  %v809 = vadd.f32 0.0, %v808
  %v810 = vpop.f32.mrb[0].mxu0
  %v811 = vpop.f32.mrb[0].mxu0
  %v812 = vadd.f32 0.0, %v811
  %v813 = vpop.f32.mrb[0].mxu0
  %814 = vmatprep.mubr.bf16.mxu0 %v764
  %815 = vmatmul.mubr.bf16.gmra.mrb[0].mxu0 %v750
  %v816 = vpop.f32.mrb[0].mxu0
  %v817 = vadd.f32 0.0, %v816
  %v818 = vpop.f32.mrb[0].mxu0
  %v819 = vpop.f32.mrb[0].mxu0
  %v820 = vpop.f32.mrb[0].mxu0
  %821 = vdwg.mxu0
  %v823 = vshrl.u32 %v336, 16
  %v825 = vshll.u32 %v336, 16
  %v827 = vrot.slane %v825, 1
  %v828 = vor.u32 %v823, %v827
  %v830 = vshll.u32 %v337, 16
  %v832 = vrot.slane %v830, 1
  %v833 = vsel %vm545, %v828, %v832
  %v834 = vshrl.u32 %v337, 16
  %v836 = vor.u32 %v834, %v832
  %v838 = vshll.u32 %v338, 16
  %v840 = vrot.slane %v838, 1
  %v841 = vsel %vm545, %v836, %v840
  %v842 = vshrl.u32 %v338, 16
  %v844 = vor.u32 %v842, %v840
  %v849 = vsel %vm215, %v833, 0
  %v852 = vsel %vm215, %v841, 0
  %v855 = vsel %vm215, %v844, 0
  %857 = vmatprep.subr.bf16.mxu0 0
  %858 = vmatpush1.bf16.msra.mxu0 %v643
  %859 = vmatprep.subr.bf16.mxu0 0
  %860 = vmatpush1.bf16.msra.mxu0 %v644
  %861 = vmatprep.subr.bf16.mxu0 0
  %862 = vmatpush1.bf16.msra.mxu0 %v645
  %863 = vmatprep.subr.bf16.mxu0 0
  %864 = vmatpush1.bf16.msra.mxu0 %v646
  %865 = vmatprep.subr.bf16.mxu0 0
  %866 = vmatpush1.bf16.msra.mxu0 %v647
  %867 = vmatprep.subr.bf16.mxu0 0
  %868 = vmatpush1.bf16.msra.mxu0 %v648
  %869 = vmatprep.subr.bf16.mxu0 0
  %870 = vmatpush1.bf16.msra.mxu0 %v649
  %871 = vmatprep.subr.bf16.mxu0 0
  %872 = vmatpush1.bf16.msra.mxu0 %v650
  %873 = vmatprep.subr.bf16.mxu0 0
  %874 = vmatpush1.bf16.msra.mxu0 %v651
  %875 = vmatprep.subr.bf16.mxu0 0
  %876 = vmatpush1.bf16.msra.mxu0 %v652
  %877 = vmatprep.subr.bf16.mxu0 0
  %878 = vmatpush1.bf16.msra.mxu0 %v653
  %879 = vmatprep.subr.bf16.mxu0 0
  %880 = vmatpush1.bf16.msra.mxu0 %v654
  %881 = vmatprep.subr.bf16.mxu0 0
  %882 = vmatpush1.bf16.msra.mxu0 0
  %883 = vmatprep.subr.bf16.mxu0 0
  %884 = vmatpush1.bf16.msra.mxu0 0
  %885 = vmatprep.subr.bf16.mxu0 0
  %886 = vmatpush1.bf16.msra.mxu0 0
  %887 = vmatprep.subr.bf16.mxu0 0
  %888 = vmatpush1.bf16.msra.mxu0 0
  %889 = vmatprep.mubr.bf16.mxu0 %v849
  %890 = vmatmul.mubr.bf16.gmra.mrb[0].mxu0 %v569
  %v891 = vpop.f32.mrb[0].mxu0
  %v892 = vadd.f32 %v801, %v891
  %v893 = vpop.f32.mrb[0].mxu0
  %v894 = vpop.f32.mrb[0].mxu0
  %v895 = vadd.f32 %v804, %v894
  %v896 = vpop.f32.mrb[0].mxu0
  %897 = vmatprep.mubr.bf16.mxu0 %v852
  %898 = vmatmul.mubr.bf16.gmra.mrb[0].mxu0 %v585
  %v899 = vpop.f32.mrb[0].mxu0
  %v900 = vadd.f32 %v809, %v899
  %v901 = vpop.f32.mrb[0].mxu0
  %v902 = vpop.f32.mrb[0].mxu0
  %v903 = vadd.f32 %v812, %v902
  %v904 = vpop.f32.mrb[0].mxu0
  %905 = vmatprep.mubr.bf16.mxu0 %v855
  %906 = vmatmul.mubr.bf16.gmra.mrb[0].mxu0 %v591
  %v907 = vpop.f32.mrb[0].mxu0
  %v908 = vadd.f32 %v817, %v907
  %v909 = vpop.f32.mrb[0].mxu0
  %v910 = vpop.f32.mrb[0].mxu0
  %v911 = vpop.f32.mrb[0].mxu0
  %912 = vdwg.mxu0
  %v913 = vld [vmem:[#allocation2 + $0x10] sm:$0xfc]
  %v914 = vld [vmem:[#allocation2 + $0x18] sm:$0xfc]
  %v915 = vld [vmem:[#allocation2 + $0xb0] sm:$0x3f]
  %v916 = vld [vmem:[#allocation2 + $0xb8] sm:$0x3f]
  %v917 = vpack.c.bf16 %v332, %v913
  %v918 = vpack.c.bf16 %v340, %v914
  %v919 = vpack.c.bf16 %v915, %v915
  %v920 = vpack.c.bf16 %v916, %v916
  %v926 = vrot.slane %v917, 1
  %v927 = vsel %vm394, %v926, %v748
  %v928 = vrot.slane %v918, 1
  %v929 = vrot.slane %v345, 1
  %v930 = vsel %vm394, %v928, %v929
  %v931 = vrot.slane %v919, 1
  %v932 = vsel %vm394, %v748, %v931
  %v933 = vrot.slane %v920, 1
  %v934 = vsel %vm394, %v929, %v933
  %v939 = vsel %vm215, %v930, 0
  %v942 = vsel %vm215, %v934, 0
  %v945 = vsel %vm215, %v933, 0
  %947 = vmatprep.subr.bf16.mxu0 0
  %948 = vmatpush1.bf16.msra.mxu0 %v456
  %949 = vmatprep.subr.bf16.mxu0 0
  %950 = vmatpush1.bf16.msra.mxu0 %v457
  %951 = vmatprep.subr.bf16.mxu0 0
  %952 = vmatpush1.bf16.msra.mxu0 %v458
  %953 = vmatprep.subr.bf16.mxu0 0
  %954 = vmatpush1.bf16.msra.mxu0 %v459
  %955 = vmatprep.subr.bf16.mxu0 0
  %956 = vmatpush1.bf16.msra.mxu0 %v460
  %957 = vmatprep.subr.bf16.mxu0 0
  %958 = vmatpush1.bf16.msra.mxu0 %v461
  %959 = vmatprep.subr.bf16.mxu0 0
  %960 = vmatpush1.bf16.msra.mxu0 %v462
  %961 = vmatprep.subr.bf16.mxu0 0
  %962 = vmatpush1.bf16.msra.mxu0 %v463
  %963 = vmatprep.subr.bf16.mxu0 0
  %964 = vmatpush1.bf16.msra.mxu0 %v464
  %965 = vmatprep.subr.bf16.mxu0 0
  %966 = vmatpush1.bf16.msra.mxu0 %v465
  %967 = vmatprep.subr.bf16.mxu0 0
  %968 = vmatpush1.bf16.msra.mxu0 %v466
  %969 = vmatprep.subr.bf16.mxu0 0
  %970 = vmatpush1.bf16.msra.mxu0 %v467
  %971 = vmatprep.subr.bf16.mxu0 0
  %972 = vmatpush1.bf16.msra.mxu0 0
  %973 = vmatprep.subr.bf16.mxu0 0
  %974 = vmatpush1.bf16.msra.mxu0 0
  %975 = vmatprep.subr.bf16.mxu0 0
  %976 = vmatpush1.bf16.msra.mxu0 0
  %977 = vmatprep.subr.bf16.mxu0 0
  %978 = vmatpush1.bf16.msra.mxu0 0
  %979 = vmatprep.mubr.bf16.mxu0 %v939
  %980 = vmatmul.mubr.bf16.gmra.mrb[0].mxu0 %v927
  %v981 = vpop.f32.mrb[0].mxu0
  %v982 = vadd.f32 0.0, %v981
  %v983 = vpop.f32.mrb[0].mxu0
  %v984 = vpop.f32.mrb[0].mxu0
  %v985 = vadd.f32 0.0, %v984
  %v986 = vpop.f32.mrb[0].mxu0
  %987 = vmatprep.mubr.bf16.mxu0 %v942
  %988 = vmatmul.mubr.bf16.gmra.mrb[0].mxu0 %v932
  %v989 = vpop.f32.mrb[0].mxu0
  %v990 = vadd.f32 0.0, %v989
  %v991 = vpop.f32.mrb[0].mxu0
  %v992 = vpop.f32.mrb[0].mxu0
  %v993 = vadd.f32 0.0, %v992
  %v994 = vpop.f32.mrb[0].mxu0
  %995 = vmatprep.mubr.bf16.mxu0 %v945
  %996 = vmatmul.mubr.bf16.gmra.mrb[0].mxu0 %v931
  %v997 = vpop.f32.mrb[0].mxu0
  %v998 = vadd.f32 0.0, %v997
  %v999 = vpop.f32.mrb[0].mxu0
  %v1000 = vpop.f32.mrb[0].mxu0
  %v1001 = vpop.f32.mrb[0].mxu0
  %1002 = vdwg.mxu0
  %v1004 = vshrl.u32 %v344, 16
  %v1006 = vshll.u32 %v344, 16
  %v1008 = vrot.slane %v1006, 1
  %v1009 = vor.u32 %v1004, %v1008
  %v1011 = vshll.u32 %v345, 16
  %v1013 = vrot.slane %v1011, 1
  %v1014 = vsel %vm545, %v1009, %v1013
  %v1015 = vshrl.u32 %v345, 16
  %v1017 = vor.u32 %v1015, %v1013
  %v1019 = vshll.u32 %v346, 16
  %v1021 = vrot.slane %v1019, 1
  %v1022 = vsel %vm545, %v1017, %v1021
  %v1023 = vshrl.u32 %v346, 16
  %v1025 = vor.u32 %v1023, %v1021
  %v1030 = vsel %vm215, %v1014, 0
  %v1033 = vsel %vm215, %v1022, 0
  %v1036 = vsel %vm215, %v1025, 0
  %1038 = vmatprep.subr.bf16.mxu0 0
  %1039 = vmatpush1.bf16.msra.mxu0 %v643
  %1040 = vmatprep.subr.bf16.mxu0 0
  %1041 = vmatpush1.bf16.msra.mxu0 %v644
  %1042 = vmatprep.subr.bf16.mxu0 0
  %1043 = vmatpush1.bf16.msra.mxu0 %v645
  %1044 = vmatprep.subr.bf16.mxu0 0
  %1045 = vmatpush1.bf16.msra.mxu0 %v646
  %1046 = vmatprep.subr.bf16.mxu0 0
  %1047 = vmatpush1.bf16.msra.mxu0 %v647
  %1048 = vmatprep.subr.bf16.mxu0 0
  %1049 = vmatpush1.bf16.msra.mxu0 %v648
  %1050 = vmatprep.subr.bf16.mxu0 0
  %1051 = vmatpush1.bf16.msra.mxu0 %v649
  %1052 = vmatprep.subr.bf16.mxu0 0
  %1053 = vmatpush1.bf16.msra.mxu0 %v650
  %1054 = vmatprep.subr.bf16.mxu0 0
  %1055 = vmatpush1.bf16.msra.mxu0 %v651
  %1056 = vmatprep.subr.bf16.mxu0 0
  %1057 = vmatpush1.bf16.msra.mxu0 %v652
  %1058 = vmatprep.subr.bf16.mxu0 0
  %1059 = vmatpush1.bf16.msra.mxu0 %v653
  %1060 = vmatprep.subr.bf16.mxu0 0
  %1061 = vmatpush1.bf16.msra.mxu0 %v654
  %1062 = vmatprep.subr.bf16.mxu0 0
  %1063 = vmatpush1.bf16.msra.mxu0 0
  %1064 = vmatprep.subr.bf16.mxu0 0
  %1065 = vmatpush1.bf16.msra.mxu0 0
  %1066 = vmatprep.subr.bf16.mxu0 0
  %1067 = vmatpush1.bf16.msra.mxu0 0
  %1068 = vmatprep.subr.bf16.mxu0 0
  %1069 = vmatpush1.bf16.msra.mxu0 0
  %1070 = vmatprep.mubr.bf16.mxu0 %v1030
  %1071 = vmatmul.mubr.bf16.gmra.mrb[0].mxu0 %v833
  %v1072 = vpop.f32.mrb[0].mxu0
  %v1073 = vadd.f32 %v982, %v1072
  %v1074 = vpop.f32.mrb[0].mxu0
  %v1075 = vpop.f32.mrb[0].mxu0
  %v1076 = vadd.f32 %v985, %v1075
  %v1077 = vpop.f32.mrb[0].mxu0
  %1078 = vmatprep.mubr.bf16.mxu0 %v1033
  %1079 = vmatmul.mubr.bf16.gmra.mrb[0].mxu0 %v841
  %v1080 = vpop.f32.mrb[0].mxu0
  %v1081 = vadd.f32 %v990, %v1080
  %v1082 = vpop.f32.mrb[0].mxu0
  %v1083 = vpop.f32.mrb[0].mxu0
  %v1084 = vadd.f32 %v993, %v1083
  %v1085 = vpop.f32.mrb[0].mxu0
  %1086 = vmatprep.mubr.bf16.mxu0 %v1036
  %1087 = vmatmul.mubr.bf16.gmra.mrb[0].mxu0 %v844
  %v1088 = vpop.f32.mrb[0].mxu0
  %v1089 = vadd.f32 %v998, %v1088
  %v1090 = vpop.f32.mrb[0].mxu0
  %v1091 = vpop.f32.mrb[0].mxu0
  %v1092 = vpop.f32.mrb[0].mxu0
  %1093 = vdwg.mxu0
  %v1094 = vld [vmem:[#allocation2 + $0x18] sm:$0xfc]
  %v1095 = vld [vmem:[#allocation2 + $0x20] sm:$0xfc]
  %v1096 = vld [vmem:[#allocation2 + $0xb8] sm:$0x3f]
  %v1097 = vld [vmem:[#allocation2 + $0xc0] sm:$0x3f]
  %v1098 = vpack.c.bf16 %v340, %v1094
  %v1099 = vpack.c.bf16 %v348, %v1095
  %v1100 = vpack.c.bf16 %v1096, %v1096
  %v1101 = vpack.c.bf16 %v1097, %v1097
  %v1107 = vrot.slane %v1098, 1
  %v1108 = vsel %vm394, %v1107, %v929
  %v1109 = vrot.slane %v1099, 1
  %v1110 = vrot.slane %v353, 1
  %v1111 = vsel %vm394, %v1109, %v1110
  %v1112 = vrot.slane %v1100, 1
  %v1113 = vsel %vm394, %v929, %v1112
  %v1114 = vrot.slane %v1101, 1
  %v1115 = vsel %vm394, %v1110, %v1114
  %v1120 = vsel %vm215, %v1111, 0
  %v1123 = vsel %vm215, %v1115, 0
  %v1126 = vsel %vm215, %v1114, 0
  %1128 = vmatprep.subr.bf16.mxu0 0
  %1129 = vmatpush1.bf16.msra.mxu0 %v456
  %1130 = vmatprep.subr.bf16.mxu0 0
  %1131 = vmatpush1.bf16.msra.mxu0 %v457
  %1132 = vmatprep.subr.bf16.mxu0 0
  %1133 = vmatpush1.bf16.msra.mxu0 %v458
  %1134 = vmatprep.subr.bf16.mxu0 0
  %1135 = vmatpush1.bf16.msra.mxu0 %v459
  %1136 = vmatprep.subr.bf16.mxu0 0
  %1137 = vmatpush1.bf16.msra.mxu0 %v460
  %1138 = vmatprep.subr.bf16.mxu0 0
  %1139 = vmatpush1.bf16.msra.mxu0 %v461
  %1140 = vmatprep.subr.bf16.mxu0 0
  %1141 = vmatpush1.bf16.msra.mxu0 %v462
  %1142 = vmatprep.subr.bf16.mxu0 0
  %1143 = vmatpush1.bf16.msra.mxu0 %v463
  %1144 = vmatprep.subr.bf16.mxu0 0
  %1145 = vmatpush1.bf16.msra.mxu0 %v464
  %1146 = vmatprep.subr.bf16.mxu0 0
  %1147 = vmatpush1.bf16.msra.mxu0 %v465
  %1148 = vmatprep.subr.bf16.mxu0 0
  %1149 = vmatpush1.bf16.msra.mxu0 %v466
  %1150 = vmatprep.subr.bf16.mxu0 0
  %1151 = vmatpush1.bf16.msra.mxu0 %v467
  %1152 = vmatprep.subr.bf16.mxu0 0
  %1153 = vmatpush1.bf16.msra.mxu0 0
  %1154 = vmatprep.subr.bf16.mxu0 0
  %1155 = vmatpush1.bf16.msra.mxu0 0
  %1156 = vmatprep.subr.bf16.mxu0 0
  %1157 = vmatpush1.bf16.msra.mxu0 0
  %1158 = vmatprep.subr.bf16.mxu0 0
  %1159 = vmatpush1.bf16.msra.mxu0 0
  %1160 = vmatprep.mubr.bf16.mxu0 %v1120
  %1161 = vmatmul.mubr.bf16.gmra.mrb[0].mxu0 %v1108
  %v1162 = vpop.f32.mrb[0].mxu0
  %v1163 = vadd.f32 0.0, %v1162
  %v1164 = vpop.f32.mrb[0].mxu0
  %v1165 = vpop.f32.mrb[0].mxu0
  %v1166 = vadd.f32 0.0, %v1165
  %v1167 = vpop.f32.mrb[0].mxu0
  %1168 = vmatprep.mubr.bf16.mxu0 %v1123
  %1169 = vmatmul.mubr.bf16.gmra.mrb[0].mxu0 %v1113
  %v1170 = vpop.f32.mrb[0].mxu0
  %v1171 = vadd.f32 0.0, %v1170
  %v1172 = vpop.f32.mrb[0].mxu0
  %v1173 = vpop.f32.mrb[0].mxu0
  %v1174 = vadd.f32 0.0, %v1173
  %v1175 = vpop.f32.mrb[0].mxu0
  %1176 = vmatprep.mubr.bf16.mxu0 %v1126
  %1177 = vmatmul.mubr.bf16.gmra.mrb[0].mxu0 %v1112
  %v1178 = vpop.f32.mrb[0].mxu0
  %v1179 = vadd.f32 0.0, %v1178
  %v1180 = vpop.f32.mrb[0].mxu0
  %v1181 = vpop.f32.mrb[0].mxu0
  %v1182 = vpop.f32.mrb[0].mxu0
  %1183 = vdwg.mxu0
  %v1185 = vshrl.u32 %v352, 16
  %v1187 = vshll.u32 %v352, 16
  %v1189 = vrot.slane %v1187, 1
  %v1190 = vor.u32 %v1185, %v1189
  %v1192 = vshll.u32 %v353, 16
  %v1194 = vrot.slane %v1192, 1
  %v1195 = vsel %vm545, %v1190, %v1194
  %v1196 = vshrl.u32 %v353, 16
  %v1198 = vor.u32 %v1196, %v1194
  %v1200 = vshll.u32 %v354, 16
  %v1202 = vrot.slane %v1200, 1
  %v1203 = vsel %vm545, %v1198, %v1202
  %v1204 = vshrl.u32 %v354, 16
  %v1206 = vor.u32 %v1204, %v1202
  %v1211 = vsel %vm215, %v1195, 0
  %v1214 = vsel %vm215, %v1203, 0
  %v1217 = vsel %vm215, %v1206, 0
  %1219 = vmatprep.subr.bf16.mxu0 0
  %1220 = vmatpush1.bf16.msra.mxu0 %v643
  %1221 = vmatprep.subr.bf16.mxu0 0
  %1222 = vmatpush1.bf16.msra.mxu0 %v644
  %1223 = vmatprep.subr.bf16.mxu0 0
  %1224 = vmatpush1.bf16.msra.mxu0 %v645
  %1225 = vmatprep.subr.bf16.mxu0 0
  %1226 = vmatpush1.bf16.msra.mxu0 %v646
  %1227 = vmatprep.subr.bf16.mxu0 0
  %1228 = vmatpush1.bf16.msra.mxu0 %v647
  %1229 = vmatprep.subr.bf16.mxu0 0
  %1230 = vmatpush1.bf16.msra.mxu0 %v648
  %1231 = vmatprep.subr.bf16.mxu0 0
  %1232 = vmatpush1.bf16.msra.mxu0 %v649
  %1233 = vmatprep.subr.bf16.mxu0 0
  %1234 = vmatpush1.bf16.msra.mxu0 %v650
  %1235 = vmatprep.subr.bf16.mxu0 0
  %1236 = vmatpush1.bf16.msra.mxu0 %v651
  %1237 = vmatprep.subr.bf16.mxu0 0
  %1238 = vmatpush1.bf16.msra.mxu0 %v652
  %1239 = vmatprep.subr.bf16.mxu0 0
  %1240 = vmatpush1.bf16.msra.mxu0 %v653
  %1241 = vmatprep.subr.bf16.mxu0 0
  %1242 = vmatpush1.bf16.msra.mxu0 %v654
  %1243 = vmatprep.subr.bf16.mxu0 0
  %1244 = vmatpush1.bf16.msra.mxu0 0
  %1245 = vmatprep.subr.bf16.mxu0 0
  %1246 = vmatpush1.bf16.msra.mxu0 0
  %1247 = vmatprep.subr.bf16.mxu0 0
  %1248 = vmatpush1.bf16.msra.mxu0 0
  %1249 = vmatprep.subr.bf16.mxu0 0
  %1250 = vmatpush1.bf16.msra.mxu0 0
  %1251 = vmatprep.mubr.bf16.mxu0 %v1211
  %1252 = vmatmul.mubr.bf16.gmra.mrb[0].mxu0 %v1014
  %v1253 = vpop.f32.mrb[0].mxu0
  %v1254 = vadd.f32 %v1163, %v1253
  %v1255 = vpop.f32.mrb[0].mxu0
  %v1256 = vpop.f32.mrb[0].mxu0
  %v1257 = vadd.f32 %v1166, %v1256
  %v1258 = vpop.f32.mrb[0].mxu0
  %1259 = vmatprep.mubr.bf16.mxu0 %v1214
  %1260 = vmatmul.mubr.bf16.gmra.mrb[0].mxu0 %v1022
  %v1261 = vpop.f32.mrb[0].mxu0
  %v1262 = vadd.f32 %v1171, %v1261
  %v1263 = vpop.f32.mrb[0].mxu0
  %v1264 = vpop.f32.mrb[0].mxu0
  %v1265 = vadd.f32 %v1174, %v1264
  %v1266 = vpop.f32.mrb[0].mxu0
  %1267 = vmatprep.mubr.bf16.mxu0 %v1217
  %1268 = vmatmul.mubr.bf16.gmra.mrb[0].mxu0 %v1025
  %v1269 = vpop.f32.mrb[0].mxu0
  %v1270 = vadd.f32 %v1179, %v1269
  %v1271 = vpop.f32.mrb[0].mxu0
  %v1272 = vpop.f32.mrb[0].mxu0
  %v1273 = vpop.f32.mrb[0].mxu0
  %1274 = vdwg.mxu0
  %s1275 = scalar_lea.vmem %s3, 192
  %v1276 = vld [vmem:[%s1275] sm:$0xf]
  %v1277 = vld [vmem:[%s1275 + $0x4] sm:$0xf]
  %v1278 = vld [vmem:[%s1275 + $0x8] sm:$0xf]
  %v1279 = vld [vmem:[%s1275 + $0xc] sm:$0xf]
  %v1280 = vld [vmem:[%s1275 + $0x10] sm:$0xf]
  %v1281 = vld [vmem:[%s1275 + $0x14] sm:$0xf]
  %v1282 = vld [vmem:[%s1275 + $0x18] sm:$0xf]
  %v1283 = vld [vmem:[%s1275 + $0x1c] sm:$0xf]
  %v1284 = vld [vmem:[%s1275 + $0x20] sm:$0xf]
  %v1285 = vld [vmem:[%s1275 + $0x24] sm:$0xf]
  %v1286 = vld [vmem:[%s1275 + $0x28] sm:$0xf]
  %v1287 = vld [vmem:[%s1275 + $0x2c] sm:$0xf]
  %v1288 = vld [vmem:[%s1275 + $0x30] sm:$0xf]
  %v1289 = vld [vmem:[%s1275 + $0x34] sm:$0xf]
  %v1290 = vld [vmem:[%s1275 + $0x38] sm:$0xf]
  %v1291 = vld [vmem:[%s1275 + $0x3c] sm:$0xf]
  %v1292 = vld [vmem:[%s1275 + $0x40] sm:$0xf]
  %v1293 = vld [vmem:[%s1275 + $0x44] sm:$0xf]
  %v1294 = vld [vmem:[%s1275 + $0x48] sm:$0xf]
  %v1295 = vld [vmem:[%s1275 + $0x4c] sm:$0xf]
  %v1296 = vld [vmem:[%s1275 + $0x50] sm:$0xf]
  %v1297 = vld [vmem:[%s1275 + $0x54] sm:$0xf]
  %v1298 = vld [vmem:[%s1275 + $0x58] sm:$0xf]
  %v1299 = vld [vmem:[%s1275 + $0x5c] sm:$0xf]
  %v1300 = vld [vmem:[#allocation2] sm:$0xf8]
  %v1301 = vld [vmem:[#allocation2 + $0x8] sm:$0xf8]
  %v1302 = vld [vmem:[#allocation2 + $0xa0] sm:$0x7f]
  %v1303 = vld [vmem:[#allocation2 + $0xa8] sm:$0x7f]
  %v1304 = vpack.c.bf16 %v317, %v1300
  %v1305 = vpack.c.bf16 %v318, %v1301
  %v1306 = vpack.c.bf16 %v1302, %v1302
  %v1307 = vpack.c.bf16 %v1303, %v1303
  %vm1308 = vsmask.f32 6400
  %v1310 = vshrl.u32 %v1304, 16
  %v1312 = vrot.slane %v1310, 1
  %v1313 = vshll.u32 %v1304, 16
  %v1315 = vrot.slane %v1313, 2
  %v1316 = vor.u32 %v1312, %v1315
  %v1317 = vrot.slane %v570, 1
  %v1318 = vrot.slane %v554, 2
  %v1319 = vor.u32 %v1317, %v1318
  %v1320 = vsel %vm1308, %v1316, %v1319
  %v1322 = vshrl.u32 %v1305, 16
  %v1324 = vrot.slane %v1322, 1
  %v1325 = vshll.u32 %v1305, 16
  %v1327 = vrot.slane %v1325, 2
  %v1328 = vor.u32 %v1324, %v1327
  %v1329 = vrot.slane %v578, 1
  %v1330 = vrot.slane %v566, 2
  %v1331 = vor.u32 %v1329, %v1330
  %v1332 = vsel %vm1308, %v1328, %v1331
  %v1334 = vshrl.u32 %v1306, 16
  %v1336 = vrot.slane %v1334, 1
  %v1337 = vshll.u32 %v1306, 16
  %v1339 = vrot.slane %v1337, 2
  %v1340 = vor.u32 %v1336, %v1339
  %v1341 = vsel %vm1308, %v1319, %v1340
  %v1343 = vshrl.u32 %v1307, 16
  %v1345 = vrot.slane %v1343, 1
  %v1346 = vshll.u32 %v1307, 16
  %v1348 = vrot.slane %v1346, 2
  %v1349 = vor.u32 %v1345, %v1348
  %v1350 = vsel %vm1308, %v1331, %v1349
  %v1378 = vunpack.c.l.b16 %v1276
  %v1379 = vunpack.c.l.b16 %v1277
  %v1380 = vunpack.c.l.b16 %v1278
  %v1381 = vunpack.c.l.b16 %v1279
  %v1382 = vunpack.c.l.b16 %v1280
  %v1383 = vunpack.c.l.b16 %v1281
  %v1384 = vunpack.c.l.b16 %v1282
  %v1385 = vunpack.c.l.b16 %v1283
  %v1386 = vunpack.c.l.b16 %v1284
  %v1387 = vunpack.c.l.b16 %v1285
  %v1388 = vunpack.c.l.b16 %v1286
  %v1389 = vunpack.c.l.b16 %v1287
  %v1390 = vunpack.c.l.b16 %v1288
  %v1391 = vunpack.c.l.b16 %v1289
  %v1392 = vunpack.c.l.b16 %v1290
  %v1393 = vunpack.c.l.b16 %v1291
  %v1394 = vunpack.c.l.b16 %v1292
  %v1395 = vunpack.c.l.b16 %v1293
  %v1396 = vunpack.c.l.b16 %v1294
  %v1397 = vunpack.c.l.b16 %v1295
  %v1398 = vunpack.c.l.b16 %v1296
  %v1399 = vunpack.c.l.b16 %v1297
  %v1400 = vunpack.c.l.b16 %v1298
  %v1401 = vunpack.c.l.b16 %v1299
  %v1402 = vpack.c.b16 %v1379, %v1378
  %v1403 = vpack.c.b16 %v1381, %v1380
  %v1404 = vpack.c.b16 %v1383, %v1382
  %v1405 = vpack.c.b16 %v1385, %v1384
  %v1406 = vpack.c.b16 %v1387, %v1386
  %v1407 = vpack.c.b16 %v1389, %v1388
  %v1408 = vpack.c.b16 %v1391, %v1390
  %v1409 = vpack.c.b16 %v1393, %v1392
  %v1410 = vpack.c.b16 %v1395, %v1394
  %v1411 = vpack.c.b16 %v1397, %v1396
  %v1412 = vpack.c.b16 %v1399, %v1398
  %v1413 = vpack.c.b16 %v1401, %v1400
  %v1427 = vsel %vm215, %v1332, 0
  %v1430 = vsel %vm215, %v1350, 0
  %v1433 = vsel %vm215, %v1349, 0
  %1435 = vmatprep.subr.bf16.mxu0 0
  %1436 = vmatpush1.bf16.msra.mxu0 %v1402
  %1437 = vmatprep.subr.bf16.mxu0 0
  %1438 = vmatpush1.bf16.msra.mxu0 %v1403
  %1439 = vmatprep.subr.bf16.mxu0 0
  %1440 = vmatpush1.bf16.msra.mxu0 %v1404
  %1441 = vmatprep.subr.bf16.mxu0 0
  %1442 = vmatpush1.bf16.msra.mxu0 %v1405
  %1443 = vmatprep.subr.bf16.mxu0 0
  %1444 = vmatpush1.bf16.msra.mxu0 %v1406
  %1445 = vmatprep.subr.bf16.mxu0 0
  %1446 = vmatpush1.bf16.msra.mxu0 %v1407
  %1447 = vmatprep.subr.bf16.mxu0 0
  %1448 = vmatpush1.bf16.msra.mxu0 %v1408
  %1449 = vmatprep.subr.bf16.mxu0 0
  %1450 = vmatpush1.bf16.msra.mxu0 %v1409
  %1451 = vmatprep.subr.bf16.mxu0 0
  %1452 = vmatpush1.bf16.msra.mxu0 %v1410
  %1453 = vmatprep.subr.bf16.mxu0 0
  %1454 = vmatpush1.bf16.msra.mxu0 %v1411
  %1455 = vmatprep.subr.bf16.mxu0 0
  %1456 = vmatpush1.bf16.msra.mxu0 %v1412
  %1457 = vmatprep.subr.bf16.mxu0 0
  %1458 = vmatpush1.bf16.msra.mxu0 %v1413
  %1459 = vmatprep.subr.bf16.mxu0 0
  %1460 = vmatpush1.bf16.msra.mxu0 0
  %1461 = vmatprep.subr.bf16.mxu0 0
  %1462 = vmatpush1.bf16.msra.mxu0 0
  %1463 = vmatprep.subr.bf16.mxu0 0
  %1464 = vmatpush1.bf16.msra.mxu0 0
  %1465 = vmatprep.subr.bf16.mxu0 0
  %1466 = vmatpush1.bf16.msra.mxu0 0
  %1467 = vmatprep.mubr.bf16.mxu0 %v1427
  %1468 = vmatmul.mubr.bf16.gmra.mrb[0].mxu0 %v1320
  %v1469 = vpop.f32.mrb[0].mxu0
  %v1470 = vadd.f32 0.0, %v1469
  %v1471 = vpop.f32.mrb[0].mxu0
  %v1472 = vpop.f32.mrb[0].mxu0
  %v1473 = vadd.f32 0.0, %v1472
  %v1474 = vpop.f32.mrb[0].mxu0
  %1475 = vmatprep.mubr.bf16.mxu0 %v1430
  %1476 = vmatmul.mubr.bf16.gmra.mrb[0].mxu0 %v1341
  %v1477 = vpop.f32.mrb[0].mxu0
  %v1478 = vadd.f32 0.0, %v1477
  %v1479 = vpop.f32.mrb[0].mxu0
  %v1480 = vpop.f32.mrb[0].mxu0
  %v1481 = vadd.f32 0.0, %v1480
  %v1482 = vpop.f32.mrb[0].mxu0
  %1483 = vmatprep.mubr.bf16.mxu0 %v1433
  %1484 = vmatmul.mubr.bf16.gmra.mrb[0].mxu0 %v1340
  %v1485 = vpop.f32.mrb[0].mxu0
  %v1486 = vadd.f32 0.0, %v1485
  %v1487 = vpop.f32.mrb[0].mxu0
  %v1488 = vpop.f32.mrb[0].mxu0
  %v1489 = vpop.f32.mrb[0].mxu0
  %1490 = vdwg.mxu0
  %v1491 = vadd.f32 %v711, %v1470
  %v1492 = vadd.f32 %v714, %v1473
  %v1493 = vadd.f32 %v719, %v1478
  %v1494 = vadd.f32 %v722, %v1481
  %v1495 = vadd.f32 %v727, %v1486
  %v1496 = vld [vmem:[#allocation2 + $0x8] sm:$0xf8]
  %v1497 = vld [vmem:[#allocation2 + $0x10] sm:$0xf8]
  %v1498 = vld [vmem:[#allocation2 + $0xa8] sm:$0x7f]
  %v1499 = vld [vmem:[#allocation2 + $0xb0] sm:$0x7f]
  %v1500 = vpack.c.bf16 %v318, %v1496
  %v1501 = vpack.c.bf16 %v332, %v1497
  %v1502 = vpack.c.bf16 %v1498, %v1498
  %v1503 = vpack.c.bf16 %v1499, %v1499
  %v1505 = vshrl.u32 %v1500, 16
  %v1507 = vrot.slane %v1505, 1
  %v1508 = vshll.u32 %v1500, 16
  %v1510 = vrot.slane %v1508, 2
  %v1511 = vor.u32 %v1507, %v1510
  %v1512 = vsel %vm1308, %v1511, %v1331
  %v1514 = vshrl.u32 %v1501, 16
  %v1516 = vrot.slane %v1514, 1
  %v1517 = vshll.u32 %v1501, 16
  %v1519 = vrot.slane %v1517, 2
  %v1520 = vor.u32 %v1516, %v1519
  %v1521 = vrot.slane %v834, 1
  %v1522 = vrot.slane %v830, 2
  %v1523 = vor.u32 %v1521, %v1522
  %v1524 = vsel %vm1308, %v1520, %v1523
  %v1526 = vshrl.u32 %v1502, 16
  %v1528 = vrot.slane %v1526, 1
  %v1529 = vshll.u32 %v1502, 16
  %v1531 = vrot.slane %v1529, 2
  %v1532 = vor.u32 %v1528, %v1531
  %v1533 = vsel %vm1308, %v1331, %v1532
  %v1535 = vshrl.u32 %v1503, 16
  %v1537 = vrot.slane %v1535, 1
  %v1538 = vshll.u32 %v1503, 16
  %v1540 = vrot.slane %v1538, 2
  %v1541 = vor.u32 %v1537, %v1540
  %v1542 = vsel %vm1308, %v1523, %v1541
  %v1547 = vsel %vm215, %v1524, 0
  %v1550 = vsel %vm215, %v1542, 0
  %v1553 = vsel %vm215, %v1541, 0
  %1555 = vmatprep.subr.bf16.mxu0 0
  %1556 = vmatpush1.bf16.msra.mxu0 %v1402
  %1557 = vmatprep.subr.bf16.mxu0 0
  %1558 = vmatpush1.bf16.msra.mxu0 %v1403
  %1559 = vmatprep.subr.bf16.mxu0 0
  %1560 = vmatpush1.bf16.msra.mxu0 %v1404
  %1561 = vmatprep.subr.bf16.mxu0 0
  %1562 = vmatpush1.bf16.msra.mxu0 %v1405
  %1563 = vmatprep.subr.bf16.mxu0 0
  %1564 = vmatpush1.bf16.msra.mxu0 %v1406
  %1565 = vmatprep.subr.bf16.mxu0 0
  %1566 = vmatpush1.bf16.msra.mxu0 %v1407
  %1567 = vmatprep.subr.bf16.mxu0 0
  %1568 = vmatpush1.bf16.msra.mxu0 %v1408
  %1569 = vmatprep.subr.bf16.mxu0 0
  %1570 = vmatpush1.bf16.msra.mxu0 %v1409
  %1571 = vmatprep.subr.bf16.mxu0 0
  %1572 = vmatpush1.bf16.msra.mxu0 %v1410
  %1573 = vmatprep.subr.bf16.mxu0 0
  %1574 = vmatpush1.bf16.msra.mxu0 %v1411
  %1575 = vmatprep.subr.bf16.mxu0 0
  %1576 = vmatpush1.bf16.msra.mxu0 %v1412
  %1577 = vmatprep.subr.bf16.mxu0 0
  %1578 = vmatpush1.bf16.msra.mxu0 %v1413
  %1579 = vmatprep.subr.bf16.mxu0 0
  %1580 = vmatpush1.bf16.msra.mxu0 0
  %1581 = vmatprep.subr.bf16.mxu0 0
  %1582 = vmatpush1.bf16.msra.mxu0 0
  %1583 = vmatprep.subr.bf16.mxu0 0
  %1584 = vmatpush1.bf16.msra.mxu0 0
  %1585 = vmatprep.subr.bf16.mxu0 0
  %1586 = vmatpush1.bf16.msra.mxu0 0
  %1587 = vmatprep.mubr.bf16.mxu0 %v1547
  %1588 = vmatmul.mubr.bf16.gmra.mrb[0].mxu0 %v1512
  %v1589 = vpop.f32.mrb[0].mxu0
  %v1590 = vadd.f32 0.0, %v1589
  %v1591 = vpop.f32.mrb[0].mxu0
  %v1592 = vpop.f32.mrb[0].mxu0
  %v1593 = vadd.f32 0.0, %v1592
  %v1594 = vpop.f32.mrb[0].mxu0
  %1595 = vmatprep.mubr.bf16.mxu0 %v1550
  %1596 = vmatmul.mubr.bf16.gmra.mrb[0].mxu0 %v1533
  %v1597 = vpop.f32.mrb[0].mxu0
  %v1598 = vadd.f32 0.0, %v1597
  %v1599 = vpop.f32.mrb[0].mxu0
  %v1600 = vpop.f32.mrb[0].mxu0
  %v1601 = vadd.f32 0.0, %v1600
  %v1602 = vpop.f32.mrb[0].mxu0
  %1603 = vmatprep.mubr.bf16.mxu0 %v1553
  %1604 = vmatmul.mubr.bf16.gmra.mrb[0].mxu0 %v1532
  %v1605 = vpop.f32.mrb[0].mxu0
  %v1606 = vadd.f32 0.0, %v1605
  %v1607 = vpop.f32.mrb[0].mxu0
  %v1608 = vpop.f32.mrb[0].mxu0
  %v1609 = vpop.f32.mrb[0].mxu0
  %1610 = vdwg.mxu0
  %v1611 = vadd.f32 %v892, %v1590
  %v1612 = vadd.f32 %v895, %v1593
  %v1613 = vadd.f32 %v900, %v1598
  %v1614 = vadd.f32 %v903, %v1601
  %v1615 = vadd.f32 %v908, %v1606
  %v1616 = vld [vmem:[#allocation2 + $0x10] sm:$0xf8]
  %v1617 = vld [vmem:[#allocation2 + $0x18] sm:$0xf8]
  %v1618 = vld [vmem:[#allocation2 + $0xb0] sm:$0x7f]
  %v1619 = vld [vmem:[#allocation2 + $0xb8] sm:$0x7f]
  %v1620 = vpack.c.bf16 %v332, %v1616
  %v1621 = vpack.c.bf16 %v340, %v1617
  %v1622 = vpack.c.bf16 %v1618, %v1618
  %v1623 = vpack.c.bf16 %v1619, %v1619
  %v1625 = vshrl.u32 %v1620, 16
  %v1627 = vrot.slane %v1625, 1
  %v1628 = vshll.u32 %v1620, 16
  %v1630 = vrot.slane %v1628, 2
  %v1631 = vor.u32 %v1627, %v1630
  %v1632 = vsel %vm1308, %v1631, %v1523
  %v1634 = vshrl.u32 %v1621, 16
  %v1636 = vrot.slane %v1634, 1
  %v1637 = vshll.u32 %v1621, 16
  %v1639 = vrot.slane %v1637, 2
  %v1640 = vor.u32 %v1636, %v1639
  %v1641 = vrot.slane %v1015, 1
  %v1642 = vrot.slane %v1011, 2
  %v1643 = vor.u32 %v1641, %v1642
  %v1644 = vsel %vm1308, %v1640, %v1643
  %v1646 = vshrl.u32 %v1622, 16
  %v1648 = vrot.slane %v1646, 1
  %v1649 = vshll.u32 %v1622, 16
  %v1651 = vrot.slane %v1649, 2
  %v1652 = vor.u32 %v1648, %v1651
  %v1653 = vsel %vm1308, %v1523, %v1652
  %v1655 = vshrl.u32 %v1623, 16
  %v1657 = vrot.slane %v1655, 1
  %v1658 = vshll.u32 %v1623, 16
  %v1660 = vrot.slane %v1658, 2
  %v1661 = vor.u32 %v1657, %v1660
  %v1662 = vsel %vm1308, %v1643, %v1661
  %v1667 = vsel %vm215, %v1644, 0
  %v1670 = vsel %vm215, %v1662, 0
  %v1673 = vsel %vm215, %v1661, 0
  %1675 = vmatprep.subr.bf16.mxu0 0
  %1676 = vmatpush1.bf16.msra.mxu0 %v1402
  %1677 = vmatprep.subr.bf16.mxu0 0
  %1678 = vmatpush1.bf16.msra.mxu0 %v1403
  %1679 = vmatprep.subr.bf16.mxu0 0
  %1680 = vmatpush1.bf16.msra.mxu0 %v1404
  %1681 = vmatprep.subr.bf16.mxu0 0
  %1682 = vmatpush1.bf16.msra.mxu0 %v1405
  %1683 = vmatprep.subr.bf16.mxu0 0
  %1684 = vmatpush1.bf16.msra.mxu0 %v1406
  %1685 = vmatprep.subr.bf16.mxu0 0
  %1686 = vmatpush1.bf16.msra.mxu0 %v1407
  %1687 = vmatprep.subr.bf16.mxu0 0
  %1688 = vmatpush1.bf16.msra.mxu0 %v1408
  %1689 = vmatprep.subr.bf16.mxu0 0
  %1690 = vmatpush1.bf16.msra.mxu0 %v1409
  %1691 = vmatprep.subr.bf16.mxu0 0
  %1692 = vmatpush1.bf16.msra.mxu0 %v1410
  %1693 = vmatprep.subr.bf16.mxu0 0
  %1694 = vmatpush1.bf16.msra.mxu0 %v1411
  %1695 = vmatprep.subr.bf16.mxu0 0
  %1696 = vmatpush1.bf16.msra.mxu0 %v1412
  %1697 = vmatprep.subr.bf16.mxu0 0
  %1698 = vmatpush1.bf16.msra.mxu0 %v1413
  %1699 = vmatprep.subr.bf16.mxu0 0
  %1700 = vmatpush1.bf16.msra.mxu0 0
  %1701 = vmatprep.subr.bf16.mxu0 0
  %1702 = vmatpush1.bf16.msra.mxu0 0
  %1703 = vmatprep.subr.bf16.mxu0 0
  %1704 = vmatpush1.bf16.msra.mxu0 0
  %1705 = vmatprep.subr.bf16.mxu0 0
  %1706 = vmatpush1.bf16.msra.mxu0 0
  %1707 = vmatprep.mubr.bf16.mxu0 %v1667
  %1708 = vmatmul.mubr.bf16.gmra.mrb[0].mxu0 %v1632
  %v1709 = vpop.f32.mrb[0].mxu0
  %v1710 = vadd.f32 0.0, %v1709
  %v1711 = vpop.f32.mrb[0].mxu0
  %v1712 = vpop.f32.mrb[0].mxu0
  %v1713 = vadd.f32 0.0, %v1712
  %v1714 = vpop.f32.mrb[0].mxu0
  %1715 = vmatprep.mubr.bf16.mxu0 %v1670
  %1716 = vmatmul.mubr.bf16.gmra.mrb[0].mxu0 %v1653
  %v1717 = vpop.f32.mrb[0].mxu0
  %v1718 = vadd.f32 0.0, %v1717
  %v1719 = vpop.f32.mrb[0].mxu0
  %v1720 = vpop.f32.mrb[0].mxu0
  %v1721 = vadd.f32 0.0, %v1720
  %v1722 = vpop.f32.mrb[0].mxu0
  %1723 = vmatprep.mubr.bf16.mxu0 %v1673
  %1724 = vmatmul.mubr.bf16.gmra.mrb[0].mxu0 %v1652
  %v1725 = vpop.f32.mrb[0].mxu0
  %v1726 = vadd.f32 0.0, %v1725
  %v1727 = vpop.f32.mrb[0].mxu0
  %v1728 = vpop.f32.mrb[0].mxu0
  %v1729 = vpop.f32.mrb[0].mxu0
  %1730 = vdwg.mxu0
  %v1731 = vadd.f32 %v1073, %v1710
  %v1732 = vadd.f32 %v1076, %v1713
  %v1733 = vadd.f32 %v1081, %v1718
  %v1734 = vadd.f32 %v1084, %v1721
  %v1735 = vadd.f32 %v1089, %v1726
  %v1736 = vld [vmem:[#allocation2 + $0x18] sm:$0xf8]
  %v1737 = vld [vmem:[#allocation2 + $0x20] sm:$0xf8]
  %v1738 = vld [vmem:[#allocation2 + $0xb8] sm:$0x7f]
  %v1739 = vld [vmem:[#allocation2 + $0xc0] sm:$0x7f]
  %v1740 = vpack.c.bf16 %v340, %v1736
  %v1741 = vpack.c.bf16 %v348, %v1737
  %v1742 = vpack.c.bf16 %v1738, %v1738
  %v1743 = vpack.c.bf16 %v1739, %v1739
  %v1745 = vshrl.u32 %v1740, 16
  %v1747 = vrot.slane %v1745, 1
  %v1748 = vshll.u32 %v1740, 16
  %v1750 = vrot.slane %v1748, 2
  %v1751 = vor.u32 %v1747, %v1750
  %v1752 = vsel %vm1308, %v1751, %v1643
  %v1754 = vshrl.u32 %v1741, 16
  %v1756 = vrot.slane %v1754, 1
  %v1757 = vshll.u32 %v1741, 16
  %v1759 = vrot.slane %v1757, 2
  %v1760 = vor.u32 %v1756, %v1759
  %v1761 = vrot.slane %v1196, 1
  %v1762 = vrot.slane %v1192, 2
  %v1763 = vor.u32 %v1761, %v1762
  %v1764 = vsel %vm1308, %v1760, %v1763
  %v1766 = vshrl.u32 %v1742, 16
  %v1768 = vrot.slane %v1766, 1
  %v1769 = vshll.u32 %v1742, 16
  %v1771 = vrot.slane %v1769, 2
  %v1772 = vor.u32 %v1768, %v1771
  %v1773 = vsel %vm1308, %v1643, %v1772
  %v1775 = vshrl.u32 %v1743, 16
  %v1777 = vrot.slane %v1775, 1
  %v1778 = vshll.u32 %v1743, 16
  %v1780 = vrot.slane %v1778, 2
  %v1781 = vor.u32 %v1777, %v1780
  %v1782 = vsel %vm1308, %v1763, %v1781
  %v1787 = vsel %vm215, %v1764, 0
  %v1790 = vsel %vm215, %v1782, 0
  %v1793 = vsel %vm215, %v1781, 0
  %1795 = vmatprep.subr.bf16.mxu0 0
  %1796 = vmatpush1.bf16.msra.mxu0 %v1402
  %1797 = vmatprep.subr.bf16.mxu0 0
  %1798 = vmatpush1.bf16.msra.mxu0 %v1403
  %1799 = vmatprep.subr.bf16.mxu0 0
  %1800 = vmatpush1.bf16.msra.mxu0 %v1404
  %1801 = vmatprep.subr.bf16.mxu0 0
  %1802 = vmatpush1.bf16.msra.mxu0 %v1405
  %1803 = vmatprep.subr.bf16.mxu0 0
  %1804 = vmatpush1.bf16.msra.mxu0 %v1406
  %1805 = vmatprep.subr.bf16.mxu0 0
  %1806 = vmatpush1.bf16.msra.mxu0 %v1407
  %1807 = vmatprep.subr.bf16.mxu0 0
  %1808 = vmatpush1.bf16.msra.mxu0 %v1408
  %1809 = vmatprep.subr.bf16.mxu0 0
  %1810 = vmatpush1.bf16.msra.mxu0 %v1409
  %1811 = vmatprep.subr.bf16.mxu0 0
  %1812 = vmatpush1.bf16.msra.mxu0 %v1410
  %1813 = vmatprep.subr.bf16.mxu0 0
  %1814 = vmatpush1.bf16.msra.mxu0 %v1411
  %1815 = vmatprep.subr.bf16.mxu0 0
  %1816 = vmatpush1.bf16.msra.mxu0 %v1412
  %1817 = vmatprep.subr.bf16.mxu0 0
  %1818 = vmatpush1.bf16.msra.mxu0 %v1413
  %1819 = vmatprep.subr.bf16.mxu0 0
  %1820 = vmatpush1.bf16.msra.mxu0 0
  %1821 = vmatprep.subr.bf16.mxu0 0
  %1822 = vmatpush1.bf16.msra.mxu0 0
  %1823 = vmatprep.subr.bf16.mxu0 0
  %1824 = vmatpush1.bf16.msra.mxu0 0
  %1825 = vmatprep.subr.bf16.mxu0 0
  %1826 = vmatpush1.bf16.msra.mxu0 0
  %1827 = vmatprep.mubr.bf16.mxu0 %v1787
  %1828 = vmatmul.mubr.bf16.gmra.mrb[0].mxu0 %v1752
  %v1829 = vpop.f32.mrb[0].mxu0
  %v1830 = vadd.f32 0.0, %v1829
  %v1831 = vpop.f32.mrb[0].mxu0
  %v1832 = vpop.f32.mrb[0].mxu0
  %v1833 = vadd.f32 0.0, %v1832
  %v1834 = vpop.f32.mrb[0].mxu0
  %1835 = vmatprep.mubr.bf16.mxu0 %v1790
  %1836 = vmatmul.mubr.bf16.gmra.mrb[0].mxu0 %v1773
  %v1837 = vpop.f32.mrb[0].mxu0
  %v1838 = vadd.f32 0.0, %v1837
  %v1839 = vpop.f32.mrb[0].mxu0
  %v1840 = vpop.f32.mrb[0].mxu0
  %v1841 = vadd.f32 0.0, %v1840
  %v1842 = vpop.f32.mrb[0].mxu0
  %1843 = vmatprep.mubr.bf16.mxu0 %v1793
  %1844 = vmatmul.mubr.bf16.gmra.mrb[0].mxu0 %v1772
  %v1845 = vpop.f32.mrb[0].mxu0
  %v1846 = vadd.f32 0.0, %v1845
  %v1847 = vpop.f32.mrb[0].mxu0
  %v1848 = vpop.f32.mrb[0].mxu0
  %v1849 = vpop.f32.mrb[0].mxu0
  %1850 = vdwg.mxu0
  %v1851 = vadd.f32 %v1254, %v1830
  %v1852 = vadd.f32 %v1257, %v1833
  %v1853 = vadd.f32 %v1262, %v1838
  %v1854 = vadd.f32 %v1265, %v1841
  %v1855 = vadd.f32 %v1270, %v1846
  %1856 = vst [vmem:[%s4] sm:$0xff] %v1491
  %1857 = vst [vmem:[%s4 + $0x20] sm:$0xff] %v1492
  %vm1861 = vcmask 1043456
  %v1862 = vrot.slane %v1493, 4
  %v1863 = vrot.slane %v1494, 4
  %v1864 = vsel %vm1861, %v1862, %v1863
  %v1865 = vrot.slane %v1495, 4
  %v1866 = vsel %vm1861, %v1863, %v1865
  %s1869 = scalar_lea.vmem %s4, 64
  %1870 = vst [vmem:[%s1869] sm:$0xff] %v1864
  %1871 = vst [vmem:[%s1869 + $0x20] sm:$0xff] %v1866
  %1872 = vst [vmem:[%s4 + $0x8] sm:$0xff] %v1611
  %1873 = vst [vmem:[%s4 + $0x28] sm:$0xff] %v1612
  %v1877 = vrot.slane %v1613, 4
  %v1878 = vrot.slane %v1614, 4
  %v1879 = vsel %vm1861, %v1877, %v1878
  %v1880 = vrot.slane %v1615, 4
  %v1881 = vsel %vm1861, %v1878, %v1880
  %1884 = vst [vmem:[%s1869 + $0x8] sm:$0xff] %v1879
  %1885 = vst [vmem:[%s1869 + $0x28] sm:$0xff] %v1881
  %1886 = vst [vmem:[%s4 + $0x10] sm:$0xff] %v1731
  %1887 = vst [vmem:[%s4 + $0x30] sm:$0xff] %v1732
  %v1891 = vrot.slane %v1733, 4
  %v1892 = vrot.slane %v1734, 4
  %v1893 = vsel %vm1861, %v1891, %v1892
  %v1894 = vrot.slane %v1735, 4
  %v1895 = vsel %vm1861, %v1892, %v1894
  %1898 = vst [vmem:[%s1869 + $0x10] sm:$0xff] %v1893
  %1899 = vst [vmem:[%s1869 + $0x30] sm:$0xff] %v1895
  %1900 = vst [vmem:[%s4 + $0x18] sm:$0xff] %v1851
  %1901 = vst [vmem:[%s4 + $0x38] sm:$0xff] %v1852
  %v1905 = vrot.slane %v1853, 4
  %v1906 = vrot.slane %v1854, 4
  %v1907 = vsel %vm1861, %v1905, %v1906
  %v1908 = vrot.slane %v1855, 4
  %v1909 = vsel %vm1861, %v1906, %v1908
  %1912 = vst [vmem:[%s1869 + $0x18] sm:$0xff] %v1907
  %1913 = vst [vmem:[%s1869 + $0x38] sm:$0xff] %v1909
  // Predicated region
  $region18: #{bnconv_pallas.1} parent=0 // pred_check
    _
  $region19: #{bnconv_pallas.1} parent=0 // pred_check_branch
    %1915 = sbr.rel (0) target = $region21
  $region20: #{bnconv_pallas.1} parent=0 // pred_region
    _
  $region21: #{bnconv_pallas.1} parent=0 // pred_fallthru
    _
  // Predicated region
  $region22: #{bnconv_pallas.1} parent=0 // pred_check
    _
  $region23: #{bnconv_pallas.1} parent=0 // pred_check_branch
    %1917 = sbr.rel (0) target = $region25
  $region24: #{bnconv_pallas.1} parent=0 // pred_region
    _
  $region25: #{bnconv_pallas.1} parent=0 // pred_fallthru
    _

</llo_original>
